<compile_context>
chip_gen: v7x
topology: tpu7x:2x2x1
jax: 0.10.0
libtpu: 0.0.40
codegen_flags: <defaults>
</compile_context>

<pallas_src>
import functools

import jax
import jax.numpy as jnp
from jax import lax
from jax.experimental import pallas as pl
from jax.experimental.pallas import tpu as pltpu


# ----------------------------- helpers --------------------------------------


def _round_up(x, m):
    return (x + m - 1) // m * m


def _pick_tile(total, candidates):
    for c in candidates:
        if total % c == 0:
            return c
    return total


def _pack_gate_cols(w_t, h, h_p):
    """(K, 4h) torch-ordered [i|f|g|o] columns -> (K, 4*h_p); each gate block
    zero-padded from h to h_p columns so gate slices stay 128-lane aligned."""
    k = w_t.shape[0]
    out = jnp.zeros((k, 4 * h_p), w_t.dtype)
    for gi in range(4):
        out = out.at[:, gi * h_p:gi * h_p + h].set(w_t[:, gi * h:(gi + 1) * h])
    return out


# --------------------------- kernel 1: recurrence ----------------------------


def _lstm_recurrence_kernel(emb_ref, wih_ref, whh_ref, b_ref, hs_ref,
                            h_sc, c_sc, gx_sc):
    """One time-block of the LSTM recurrence.

    emb_ref : (T_blk, Bp, Ep)  bf16   embedded tokens (time-major block)
    wih_ref : (Ep, 4*Hp)       bf16   input->gates weights
    whh_ref : (Hp, 4*Hp)       bf16   hidden->gates weights
    b_ref   : (1, 4*Hp)        f32    b_ih + b_hh (per-gate padded)
    hs_ref  : (T_blk, Bp, Hp)  bf16   hidden states out
    h_sc    : (Bp, Hp)         bf16   recurrent h (persists across grid steps)
    c_sc    : (Bp, Hp)         f32    recurrent c (persists across grid steps)
    gx_sc   : (T_blk*Bp, 4*Hp) bf16   hoisted input-projection for this block

    NOTE: the time grid axis MUST stay "arbitrary" (sequential) because h/c
    scratch carries state across grid steps; time padding must be at the tail.
    """
    t_blk, bp, ep = emb_ref.shape
    hp = h_sc.shape[1]

    @pl.when(pl.program_id(0) == 0)
    def _():
        h_sc[...] = jnp.zeros_like(h_sc)
        c_sc[...] = jnp.zeros_like(c_sc)

    # Hoisted input projection + bias for the whole time block: one GEMM with
    # M = T_blk * Bp, f32 accumulation, stored bf16 (halves the scratch).
    x2d = emb_ref[...].reshape(t_blk * bp, ep)
    gx_sc[...] = (jnp.dot(x2d, wih_ref[...], preferred_element_type=jnp.float32)
                  + b_ref[...]).astype(gx_sc.dtype)

    whh = whh_ref[...]                       # loaded once, reused every step
    h = h_sc[...]                            # bf16: feeds the MXU directly
    c = c_sc[...]                            # f32 state
    # Fully unrolled step loop (t_blk is a small static int).
    for t in range(t_blk):
        g = (gx_sc[t * bp:(t + 1) * bp, :]
             + jnp.dot(h, whh, preferred_element_type=jnp.float32))  # (Bp,4Hp) f32
        # PyTorch gate order: i, f, g, o (each block lane-aligned to 128).
        i_g = jax.nn.sigmoid(g[:, 0 * hp:1 * hp])
        f_g = jax.nn.sigmoid(g[:, 1 * hp:2 * hp])
        g_g = jnp.tanh(g[:, 2 * hp:3 * hp])
        o_g = jax.nn.sigmoid(g[:, 3 * hp:4 * hp])
        c = f_g * c + i_g * g_g
        # h produced directly in bf16: the only consumers (next-step MXU dot,
        # hs output) are bf16, so no extra cast sits on the serial chain.
        h = (o_g * jnp.tanh(c)).astype(jnp.bfloat16)
        hs_ref[t] = h
    h_sc[...] = h
    c_sc[...] = c


# --------------------------- kernel 2: vocab projection ----------------------


def _vocab_proj_kernel(hs_ref, w_ref, b_ref, out_ref):
    """logits[m_blk, v_blk] = hs[m_blk, H] @ W[H, v_blk] + b.

    hs_ref : (m_blk, Hp)    bf16   merged (batch*time) rows, REAL batch only
    w_ref  : (Hp, v_blk)    bf16
    b_ref  : (1, v_blk)     f32
    out_ref: (m_blk, v_blk) f32    lane-dense (v_blk is a multiple of 128)
    """
    out_ref[...] = (jnp.dot(hs_ref[...], w_ref[...],
                            preferred_element_type=jnp.float32)
                    + b_ref[...]).astype(out_ref.dtype)


# --------------------------- parameter packing (one-time) --------------------


def prepare_lm_lstm_params(params):
    """Hoisted out of the jitted forward: pad/transpose/cast all weights once."""
    emb_table = params["embedding"]       # (V, E), row pad_index zeroed
    w_ih = params["w_ih"]                 # (4H, E)  torch layout
    w_hh = params["w_hh"]                 # (4H, H)
    b_ih = params["b_ih"]                 # (4H,)
    b_hh = params["b_hh"]                 # (4H,)
    w_out = params["w_out"]               # (V, H)
    b_out = params["b_out"]               # (V,)

    V, E = emb_table.shape
    H = w_hh.shape[1]
    E_p = _round_up(E, 128)
    H_p = _round_up(H, 128)
    V_p = _round_up(V, 128)

    packed = {
        # bf16 embedding table, columns padded to E_p (gather is bf16, time-major).
        "emb_table": jnp.pad(emb_table, ((0, 0), (0, E_p - E))).astype(jnp.bfloat16),
        "w_ih": jnp.pad(_pack_gate_cols(w_ih.T, H, H_p),
                        ((0, E_p - E), (0, 0))).astype(jnp.bfloat16),
        "w_hh": jnp.pad(_pack_gate_cols(w_hh.T, H, H_p),
                        ((0, H_p - H), (0, 0))).astype(jnp.bfloat16),
        "b_gates": _pack_gate_cols((b_ih + b_hh)[None, :], H, H_p).astype(jnp.float32),
        "w_out": jnp.pad(w_out.T, ((0, H_p - H), (0, V_p - V))).astype(jnp.bfloat16),
        "b_out": jnp.pad(b_out[None, :], ((0, 0), (0, V_p - V))).astype(jnp.float32),
    }
    return packed, V


# ------------------------------- forward ------------------------------------


def lm_lstm_forward(input_ids, packed, *, vocab_size, t_blk=8):
    """Full LM_LSTM forward. input_ids: (B, T) int32 -> (B, V, T) f32.
    Eval-mode VariationalDropout = identity (no-op)."""
    emb_table = packed["emb_table"]       # (V, E_p) bf16
    w_ih = packed["w_ih"]                 # (E_p, 4H_p) bf16
    w_hh = packed["w_hh"]                 # (H_p, 4H_p) bf16
    b_gates = packed["b_gates"]           # (1, 4H_p) f32
    w_out = packed["w_out"]               # (H_p, V_p) bf16
    b_out = packed["b_out"]               # (1, V_p) f32

    B, T = input_ids.shape
    E_p = emb_table.shape[1]
    H_p = w_hh.shape[0]
    V_p = w_out.shape[1]
    V = vocab_size

    B_p = _round_up(B, 16)                # 16 sublanes for bf16 operands
    T_p = _round_up(T, t_blk)

    # --- glue: bf16 time-major embedding gather (pad ids; padded batch rows /
    # tail time steps are discarded downstream, so their values are irrelevant).
    ids_p = jnp.pad(input_ids, ((0, B_p - B), (0, T_p - T)))
    emb_tm = jnp.take(emb_table, ids_p.T, axis=0)               # (T_p,B_p,E_p) bf16

    # --- kernel 1: LSTM recurrence, gridded over time blocks -----------------
    hs_tm = pl.pallas_call(
        _lstm_recurrence_kernel,
        out_shape=jax.ShapeDtypeStruct((T_p, B_p, H_p), jnp.bfloat16),
        grid_spec=pltpu.PrefetchScalarGridSpec(
            num_scalar_prefetch=0,
            grid=(T_p // t_blk,),
            in_specs=[
                pl.BlockSpec((t_blk, B_p, E_p), lambda t: (t, 0, 0)),
                pl.BlockSpec((E_p, 4 * H_p), lambda t: (0, 0)),
                pl.BlockSpec((H_p, 4 * H_p), lambda t: (0, 0)),
                pl.BlockSpec((1, 4 * H_p), lambda t: (0, 0)),
            ],
            out_specs=pl.BlockSpec((t_blk, B_p, H_p), lambda t: (t, 0, 0)),
            scratch_shapes=[
                pltpu.VMEM((B_p, H_p), jnp.bfloat16),               # h state
                pltpu.VMEM((B_p, H_p), jnp.float32),                # c state
                pltpu.VMEM((t_blk * B_p, 4 * H_p), jnp.bfloat16),   # gates_x
            ],
        ),
        compiler_params=pltpu.CompilerParams(
            dimension_semantics=("arbitrary",),        # sequential: h/c carry
            vmem_limit_bytes=64 * 1024 * 1024),
    )(emb_tm, w_ih, w_hh, b_gates)

    # Relayout only the REAL-batch slice of hs (small vs logits traffic):
    # (T_p, B, H_p) -> (B, T_p, H_p) -> (B*T_p, H_p).
    hs_2d = jnp.transpose(hs_tm[:, :B], (1, 0, 2)).reshape(B * T_p, H_p)

    M = B * T_p                                  # merged batch*time M axis
    m_blk = 256 if M >= 256 else _round_up(M, 8)
    M_p = _round_up(M, m_blk)
    if M_p != M:
        hs_2d = jnp.pad(hs_2d, ((0, M_p - M), (0, 0)))
    v_blk = _pick_tile(V_p, (512, 256, 128))

    # --- kernel 2: tiled vocab projection, real batch only, lane-dense out ---
    # K (=H_p) is a single tile, so no reduction grid axis / accumulator needed.
    logits_2d = pl.pallas_call(
        _vocab_proj_kernel,
        out_shape=jax.ShapeDtypeStruct((M_p, V_p), jnp.float32),
        grid_spec=pltpu.PrefetchScalarGridSpec(
            num_scalar_prefetch=0,
            grid=(M_p // m_blk, V_p // v_blk),
            in_specs=[
                pl.BlockSpec((m_blk, H_p), lambda m, v: (m, 0)),
                pl.BlockSpec((H_p, v_blk), lambda m, v: (0, v)),
                pl.BlockSpec((1, v_blk), lambda m, v: (0, v)),
            ],
            out_specs=pl.BlockSpec((m_blk, v_blk), lambda m, v: (m, v)),
        ),
        compiler_params=pltpu.CompilerParams(
            dimension_semantics=("parallel", "parallel"),
            vmem_limit_bytes=64 * 1024 * 1024),
    )(hs_2d, w_out, b_out)

    # Slice off padding, then apply the module's permute(0, 2, 1) on the
    # real-sized view (kernel output stays lane-dense with V on the lane axis).
    logits = logits_2d[:M].reshape(B, T_p, V_p)[:, :T, :V]
    return jnp.transpose(logits, (0, 2, 1))                        # (B, V, T)


# ------------------------------ reference -----------------------------------


def _reference_forward(input_ids, params):
    """Pure-JAX f32 reference (mirrors torch nn.LSTM + nn.Linear semantics)."""
    emb_table = params["embedding"]
    w_ih, w_hh = params["w_ih"], params["w_hh"]
    b = params["b_ih"] + params["b_hh"]
    w_out, b_out = params["w_out"], params["b_out"]
    H = w_hh.shape[1]

    emb = jnp.take(emb_table, input_ids, axis=0)                  # (B, T, E)
    B, T, _ = emb.shape

    def cell(carry, x_t):
        h, c = carry
        gates = x_t @ w_ih.T + h @ w_hh.T + b
        i_g = jax.nn.sigmoid(gates[:, 0 * H:1 * H])
        f_g = jax.nn.sigmoid(gates[:, 1 * H:2 * H])
        g_g = jnp.tanh(gates[:, 2 * H:3 * H])
        o_g = jax.nn.sigmoid(gates[:, 3 * H:4 * H])
        c_new = f_g * c + i_g * g_g
        h_new = o_g * jnp.tanh(c_new)
        return (h_new, c_new), h_new

    h0 = jnp.zeros((B, H), jnp.float32)
    c0 = jnp.zeros((B, H), jnp.float32)
    _, hs = lax.scan(cell, (h0, c0), jnp.transpose(emb, (1, 0, 2)))  # (T,B,H)
    logits = hs @ w_out.T + b_out                                    # (T,B,V)
    return jnp.transpose(logits, (1, 2, 0))                          # (B,V,T)


def _init_params(key, emb_size, hidden_size, output_size, pad_index=0):
    E, H, V = emb_size, hidden_size, output_size
    ks = jax.random.split(key, 7)
    s = 0.1
    embedding = s * jax.random.normal(ks[0], (V, E), jnp.float32)
    embedding = embedding.at[pad_index].set(0.0)      # padding_idx=pad_index
    return {
        "embedding": embedding,
        "w_ih": s * jax.random.normal(ks[1], (4 * H, E), jnp.float32),
        "w_hh": s * jax.random.normal(ks[2], (4 * H, H), jnp.float32),
        "b_ih": s * jax.random.normal(ks[3], (4 * H,), jnp.float32),
        "b_hh": s * jax.random.normal(ks[4], (4 * H,), jnp.float32),
        "w_out": s * jax.random.normal(ks[5], (V, H), jnp.float32),
        "b_out": s * jax.random.normal(ks[6], (V,), jnp.float32),
    }


if __name__ == "__main__":
    # Small LM_LSTM config: emb_size=32, hidden_size=32, output_size(vocab)=64,
    # n_layers=1, batch=2, seq_len=8, pad_index=0 (eval mode, dropout = no-op).
    EMB, HID, VOCAB, PAD = 32, 32, 64, 0
    B, T = 2, 8

    key = jax.random.PRNGKey(0)
    k_param, k_tok = jax.random.split(key)
    params = _init_params(k_param, EMB, HID, VOCAB, PAD)
    input_ids = jax.random.randint(k_tok, (B, T), 0, VOCAB, dtype=jnp.int32)

    # One-time parameter packing (hoisted out of the jitted forward).
    packed, vocab_size = prepare_lm_lstm_params(params)
    packed = jax.tree_util.tree_map(jax.block_until_ready, packed)

    fwd = jax.jit(functools.partial(lm_lstm_forward, vocab_size=vocab_size))
    out = jax.block_until_ready(fwd(input_ids, packed))
    ref = jax.block_until_ready(_reference_forward(input_ids, params))

    assert out.shape == (B, VOCAB, T), out.shape
    # bf16 MXU operands (f32 accumulation) -> slightly looser tolerance than f32.
    assert jnp.allclose(out, ref, atol=3e-2, rtol=3e-2), "mismatch vs reference"
    print("KERNEL_OK")
</pallas_src>

<mosaic_0001>
module attributes {stable_mosaic.version = 11 : i64} {
  func.func @_lstm_recurrence_kernel(%arg0: i32, %arg1: memref<8x16x128xbf16, #tpu.memory_space<vmem>>, %arg2: memref<128x512xbf16, #tpu.memory_space<vmem>>, %arg3: memref<128x512xbf16, #tpu.memory_space<vmem>>, %arg4: memref<1x512xf32, #tpu.memory_space<vmem>>, %arg5: memref<8x16x128xbf16, #tpu.memory_space<vmem>>, %arg6: memref<16x128xbf16, #tpu.memory_space<vmem>>, %arg7: memref<16x128xf32, #tpu.memory_space<vmem>>, %arg8: memref<128x512xbf16, #tpu.memory_space<vmem>>) attributes {dimension_semantics = [#tpu.dimension_semantics<arbitrary>], iteration_bounds = array<i64: 1>, scalar_prefetch = 0 : i64, scratch_operands = 3 : i64, tpu.core_type = #tpu.core_type<tc>, window_params = [{transform_indices = @transform_0, window_bounds = array<i64: 8, 16, 128>}, {pipeline_mode = #tpu.pipeline_mode<synchronous>, transform_indices = @transform_1, window_bounds = array<i64: 128, 512>}, {pipeline_mode = #tpu.pipeline_mode<synchronous>, transform_indices = @transform_2, window_bounds = array<i64: 128, 512>}, {pipeline_mode = #tpu.pipeline_mode<synchronous>, transform_indices = @transform_3, window_bounds = array<i64: 1, 512>}, {transform_indices = @transform_4, window_bounds = array<i64: 8, 16, 128>}]} {
    %c0_i32 = arith.constant 0 : i32
    %0 = arith.cmpi eq, %arg0, %c0_i32 : i32
    %1 = arith.extui %0 : i1 to i32
    %c0_i32_0 = arith.constant 0 : i32
    %2 = arith.cmpi ne, %1, %c0_i32_0 : i32
    scf.if %2 {
      %cst_77 = arith.constant 0.000000e+00 : bf16
      %281 = vector.broadcast %cst_77 : bf16 to vector<16x128xbf16>
      %c0_78 = arith.constant 0 : index
      %c0_79 = arith.constant 0 : index
      %282 = vector.load %arg6[%c0_78, %c0_79] : memref<16x128xbf16, #tpu.memory_space<vmem>>, vector<16x128xbf16>
      tpu.vector_store %arg6[%c0_78, %c0_79], %281 {strides = array<i32>} : memref<16x128xbf16, #tpu.memory_space<vmem>>, vector<16x128xbf16>,
      %cst_80 = arith.constant 0.000000e+00 : f32
      %283 = vector.broadcast %cst_80 : f32 to vector<16x128xf32>
      %c0_81 = arith.constant 0 : index
      %c0_82 = arith.constant 0 : index
      %284 = vector.load %arg7[%c0_81, %c0_82] : memref<16x128xf32, #tpu.memory_space<vmem>>, vector<16x128xf32>
      tpu.vector_store %arg7[%c0_81, %c0_82], %283 {strides = array<i32>} : memref<16x128xf32, #tpu.memory_space<vmem>>, vector<16x128xf32>,
    } else {
    }
    %c0 = arith.constant 0 : index
    %c0_1 = arith.constant 0 : index
    %c0_2 = arith.constant 0 : index
    %3 = vector.load %arg1[%c0, %c0_1, %c0_2] : memref<8x16x128xbf16, #tpu.memory_space<vmem>>, vector<8x16x128xbf16>
    %4 = vector.shape_cast %3 : vector<8x16x128xbf16> to vector<128x128xbf16>
    %c0_3 = arith.constant 0 : index
    %c0_4 = arith.constant 0 : index
    %5 = vector.load %arg2[%c0_3, %c0_4] : memref<128x512xbf16, #tpu.memory_space<vmem>>, vector<128x512xbf16>
    %cst = arith.constant dense<0.000000e+00> : vector<128x512xf32>
    %6 = tpu.matmul %4, %5, %cst {dimension_numbers = #tpu.dot_dimension_numbers<[1], [0], [0], [1], [0, 0, 1, 1], [], []>} : vector<128x128xbf16>, vector<128x512xbf16>, vector<128x512xf32> -> vector<128x512xf32>
    %c0_5 = arith.constant 0 : index
    %c0_6 = arith.constant 0 : index
    %7 = vector.load %arg4[%c0_5, %c0_6] : memref<1x512xf32, #tpu.memory_space<vmem>>, vector<1x512xf32>
    %8 = vector.broadcast %7 : vector<1x512xf32> to vector<128x512xf32>
    %9 = arith.addf %6, %8 : vector<128x512xf32>
    %10 = arith.truncf %9 : vector<128x512xf32> to vector<128x512xbf16>
    %c0_7 = arith.constant 0 : index
    %c0_8 = arith.constant 0 : index
    %11 = vector.load %arg8[%c0_7, %c0_8] : memref<128x512xbf16, #tpu.memory_space<vmem>>, vector<128x512xbf16>
    tpu.vector_store %arg8[%c0_7, %c0_8], %10 {strides = array<i32>} : memref<128x512xbf16, #tpu.memory_space<vmem>>, vector<128x512xbf16>,
    %c0_9 = arith.constant 0 : index
    %c0_10 = arith.constant 0 : index
    %12 = vector.load %arg3[%c0_9, %c0_10] : memref<128x512xbf16, #tpu.memory_space<vmem>>, vector<128x512xbf16>
    %c0_11 = arith.constant 0 : index
    %c0_12 = arith.constant 0 : index
    %13 = vector.load %arg6[%c0_11, %c0_12] : memref<16x128xbf16, #tpu.memory_space<vmem>>, vector<16x128xbf16>
    %c0_13 = arith.constant 0 : index
    %c0_14 = arith.constant 0 : index
    %14 = vector.load %arg7[%c0_13, %c0_14] : memref<16x128xf32, #tpu.memory_space<vmem>>, vector<16x128xf32>
    %c0_15 = arith.constant 0 : index
    %c0_16 = arith.constant 0 : index
    %15 = vector.load %arg8[%c0_15, %c0_16] : memref<128x512xbf16, #tpu.memory_space<vmem>>, vector<16x512xbf16>
    %cst_17 = arith.constant dense<0.000000e+00> : vector<16x512xf32>
    %16 = tpu.matmul %13, %12, %cst_17 {dimension_numbers = #tpu.dot_dimension_numbers<[1], [0], [0], [1], [0, 0, 1, 1], [], []>} : vector<16x128xbf16>, vector<128x512xbf16>, vector<16x512xf32> -> vector<16x512xf32>
    %17 = arith.extf %15 : vector<16x512xbf16> to vector<16x512xf32>
    %18 = arith.addf %17, %16 : vector<16x512xf32>
    %19 = vector.extract_strided_slice %18 {offsets = [0, 0], sizes = [16, 128], strides = [1, 1]} : vector<16x512xf32> to vector<16x128xf32>
    %20 = arith.negf %19 : vector<16x128xf32>
    %21 = math.exp %20 : vector<16x128xf32>
    %cst_18 = arith.constant 1.000000e+00 : f32
    %22 = vector.broadcast %cst_18 : f32 to vector<16x128xf32>
    %23 = arith.addf %22, %21 : vector<16x128xf32>
    %24 = arith.divf %22, %23 : vector<16x128xf32>
    %25 = vector.extract_strided_slice %18 {offsets = [0, 128], sizes = [16, 128], strides = [1, 1]} : vector<16x512xf32> to vector<16x128xf32>
    %26 = arith.negf %25 : vector<16x128xf32>
    %27 = math.exp %26 : vector<16x128xf32>
    %cst_19 = arith.constant 1.000000e+00 : f32
    %28 = vector.broadcast %cst_19 : f32 to vector<16x128xf32>
    %29 = arith.addf %28, %27 : vector<16x128xf32>
    %30 = arith.divf %28, %29 : vector<16x128xf32>
    %31 = vector.extract_strided_slice %18 {offsets = [0, 256], sizes = [16, 128], strides = [1, 1]} : vector<16x512xf32> to vector<16x128xf32>
    %32 = math.tanh %31 : vector<16x128xf32>
    %33 = vector.extract_strided_slice %18 {offsets = [0, 384], sizes = [16, 128], strides = [1, 1]} : vector<16x512xf32> to vector<16x128xf32>
    %34 = arith.negf %33 : vector<16x128xf32>
    %35 = math.exp %34 : vector<16x128xf32>
    %cst_20 = arith.constant 1.000000e+00 : f32
    %36 = vector.broadcast %cst_20 : f32 to vector<16x128xf32>
    %37 = arith.addf %36, %35 : vector<16x128xf32>
    %38 = arith.divf %36, %37 : vector<16x128xf32>
    %39 = arith.mulf %30, %14 : vector<16x128xf32>
    %40 = arith.mulf %24, %32 : vector<16x128xf32>
    %41 = arith.addf %39, %40 : vector<16x128xf32>
    %42 = math.tanh %41 : vector<16x128xf32>
    %43 = arith.mulf %38, %42 : vector<16x128xf32>
    %44 = arith.truncf %43 : vector<16x128xf32> to vector<16x128xbf16>
    %c0_21 = arith.constant 0 : index
    %c0_22 = arith.constant 0 : index
    %c0_23 = arith.constant 0 : index
    %45 = vector.load %arg5[%c0_21, %c0_22, %c0_23] : memref<8x16x128xbf16, #tpu.memory_space<vmem>>, vector<1x16x128xbf16>
    %46 = vector.shape_cast %45 : vector<1x16x128xbf16> to vector<16x128xbf16>
    %47 = vector.shape_cast %44 : vector<16x128xbf16> to vector<1x16x128xbf16>
    tpu.vector_store %arg5[%c0_21, %c0_22, %c0_23], %47 {strides = array<i32>} : memref<8x16x128xbf16, #tpu.memory_space<vmem>>, vector<1x16x128xbf16>,
    %c16 = arith.constant 16 : index
    %c0_24 = arith.constant 0 : index
    %48 = vector.load %arg8[%c16, %c0_24] : memref<128x512xbf16, #tpu.memory_space<vmem>>, vector<16x512xbf16>
    %cst_25 = arith.constant dense<0.000000e+00> : vector<16x512xf32>
    %49 = tpu.matmul %44, %12, %cst_25 {dimension_numbers = #tpu.dot_dimension_numbers<[1], [0], [0], [1], [0, 0, 1, 1], [], []>} : vector<16x128xbf16>, vector<128x512xbf16>, vector<16x512xf32> -> vector<16x512xf32>
    %50 = arith.extf %48 : vector<16x512xbf16> to vector<16x512xf32>
    %51 = arith.addf %50, %49 : vector<16x512xf32>
    %52 = vector.extract_strided_slice %51 {offsets = [0, 0], sizes = [16, 128], strides = [1, 1]} : vector<16x512xf32> to vector<16x128xf32>
    %53 = arith.negf %52 : vector<16x128xf32>
    %54 = math.exp %53 : vector<16x128xf32>
    %cst_26 = arith.constant 1.000000e+00 : f32
    %55 = vector.broadcast %cst_26 : f32 to vector<16x128xf32>
    %56 = arith.addf %55, %54 : vector<16x128xf32>
    %57 = arith.divf %55, %56 : vector<16x128xf32>
    %58 = vector.extract_strided_slice %51 {offsets = [0, 128], sizes = [16, 128], strides = [1, 1]} : vector<16x512xf32> to vector<16x128xf32>
    %59 = arith.negf %58 : vector<16x128xf32>
    %60 = math.exp %59 : vector<16x128xf32>
    %cst_27 = arith.constant 1.000000e+00 : f32
    %61 = vector.broadcast %cst_27 : f32 to vector<16x128xf32>
    %62 = arith.addf %61, %60 : vector<16x128xf32>
    %63 = arith.divf %61, %62 : vector<16x128xf32>
    %64 = vector.extract_strided_slice %51 {offsets = [0, 256], sizes = [16, 128], strides = [1, 1]} : vector<16x512xf32> to vector<16x128xf32>
    %65 = math.tanh %64 : vector<16x128xf32>
    %66 = vector.extract_strided_slice %51 {offsets = [0, 384], sizes = [16, 128], strides = [1, 1]} : vector<16x512xf32> to vector<16x128xf32>
    %67 = arith.negf %66 : vector<16x128xf32>
    %68 = math.exp %67 : vector<16x128xf32>
    %cst_28 = arith.constant 1.000000e+00 : f32
    %69 = vector.broadcast %cst_28 : f32 to vector<16x128xf32>
    %70 = arith.addf %69, %68 : vector<16x128xf32>
    %71 = arith.divf %69, %70 : vector<16x128xf32>
    %72 = arith.mulf %63, %41 : vector<16x128xf32>
    %73 = arith.mulf %57, %65 : vector<16x128xf32>
    %74 = arith.addf %72, %73 : vector<16x128xf32>
    %75 = math.tanh %74 : vector<16x128xf32>
    %76 = arith.mulf %71, %75 : vector<16x128xf32>
    %77 = arith.truncf %76 : vector<16x128xf32> to vector<16x128xbf16>
    %c1 = arith.constant 1 : index
    %c0_29 = arith.constant 0 : index
    %c0_30 = arith.constant 0 : index
    %78 = vector.load %arg5[%c1, %c0_29, %c0_30] : memref<8x16x128xbf16, #tpu.memory_space<vmem>>, vector<1x16x128xbf16>
    %79 = vector.shape_cast %78 : vector<1x16x128xbf16> to vector<16x128xbf16>
    %80 = vector.shape_cast %77 : vector<16x128xbf16> to vector<1x16x128xbf16>
    tpu.vector_store %arg5[%c1, %c0_29, %c0_30], %80 {strides = array<i32>} : memref<8x16x128xbf16, #tpu.memory_space<vmem>>, vector<1x16x128xbf16>,
    %c32 = arith.constant 32 : index
    %c0_31 = arith.constant 0 : index
    %81 = vector.load %arg8[%c32, %c0_31] : memref<128x512xbf16, #tpu.memory_space<vmem>>, vector<16x512xbf16>
    %cst_32 = arith.constant dense<0.000000e+00> : vector<16x512xf32>
    %82 = tpu.matmul %77, %12, %cst_32 {dimension_numbers = #tpu.dot_dimension_numbers<[1], [0], [0], [1], [0, 0, 1, 1], [], []>} : vector<16x128xbf16>, vector<128x512xbf16>, vector<16x512xf32> -> vector<16x512xf32>
    %83 = arith.extf %81 : vector<16x512xbf16> to vector<16x512xf32>
    %84 = arith.addf %83, %82 : vector<16x512xf32>
    %85 = vector.extract_strided_slice %84 {offsets = [0, 0], sizes = [16, 128], strides = [1, 1]} : vector<16x512xf32> to vector<16x128xf32>
    %86 = arith.negf %85 : vector<16x128xf32>
    %87 = math.exp %86 : vector<16x128xf32>
    %cst_33 = arith.constant 1.000000e+00 : f32
    %88 = vector.broadcast %cst_33 : f32 to vector<16x128xf32>
    %89 = arith.addf %88, %87 : vector<16x128xf32>
    %90 = arith.divf %88, %89 : vector<16x128xf32>
    %91 = vector.extract_strided_slice %84 {offsets = [0, 128], sizes = [16, 128], strides = [1, 1]} : vector<16x512xf32> to vector<16x128xf32>
    %92 = arith.negf %91 : vector<16x128xf32>
    %93 = math.exp %92 : vector<16x128xf32>
    %cst_34 = arith.constant 1.000000e+00 : f32
    %94 = vector.broadcast %cst_34 : f32 to vector<16x128xf32>
    %95 = arith.addf %94, %93 : vector<16x128xf32>
    %96 = arith.divf %94, %95 : vector<16x128xf32>
    %97 = vector.extract_strided_slice %84 {offsets = [0, 256], sizes = [16, 128], strides = [1, 1]} : vector<16x512xf32> to vector<16x128xf32>
    %98 = math.tanh %97 : vector<16x128xf32>
    %99 = vector.extract_strided_slice %84 {offsets = [0, 384], sizes = [16, 128], strides = [1, 1]} : vector<16x512xf32> to vector<16x128xf32>
    %100 = arith.negf %99 : vector<16x128xf32>
    %101 = math.exp %100 : vector<16x128xf32>
    %cst_35 = arith.constant 1.000000e+00 : f32
    %102 = vector.broadcast %cst_35 : f32 to vector<16x128xf32>
    %103 = arith.addf %102, %101 : vector<16x128xf32>
    %104 = arith.divf %102, %103 : vector<16x128xf32>
    %105 = arith.mulf %96, %74 : vector<16x128xf32>
    %106 = arith.mulf %90, %98 : vector<16x128xf32>
    %107 = arith.addf %105, %106 : vector<16x128xf32>
    %108 = math.tanh %107 : vector<16x128xf32>
    %109 = arith.mulf %104, %108 : vector<16x128xf32>
    %110 = arith.truncf %109 : vector<16x128xf32> to vector<16x128xbf16>
    %c2 = arith.constant 2 : index
    %c0_36 = arith.constant 0 : index
    %c0_37 = arith.constant 0 : index
    %111 = vector.load %arg5[%c2, %c0_36, %c0_37] : memref<8x16x128xbf16, #tpu.memory_space<vmem>>, vector<1x16x128xbf16>
    %112 = vector.shape_cast %111 : vector<1x16x128xbf16> to vector<16x128xbf16>
    %113 = vector.shape_cast %110 : vector<16x128xbf16> to vector<1x16x128xbf16>
    tpu.vector_store %arg5[%c2, %c0_36, %c0_37], %113 {strides = array<i32>} : memref<8x16x128xbf16, #tpu.memory_space<vmem>>, vector<1x16x128xbf16>,
    %c48 = arith.constant 48 : index
    %c0_38 = arith.constant 0 : index
    %114 = vector.load %arg8[%c48, %c0_38] : memref<128x512xbf16, #tpu.memory_space<vmem>>, vector<16x512xbf16>
    %cst_39 = arith.constant dense<0.000000e+00> : vector<16x512xf32>
    %115 = tpu.matmul %110, %12, %cst_39 {dimension_numbers = #tpu.dot_dimension_numbers<[1], [0], [0], [1], [0, 0, 1, 1], [], []>} : vector<16x128xbf16>, vector<128x512xbf16>, vector<16x512xf32> -> vector<16x512xf32>
    %116 = arith.extf %114 : vector<16x512xbf16> to vector<16x512xf32>
    %117 = arith.addf %116, %115 : vector<16x512xf32>
    %118 = vector.extract_strided_slice %117 {offsets = [0, 0], sizes = [16, 128], strides = [1, 1]} : vector<16x512xf32> to vector<16x128xf32>
    %119 = arith.negf %118 : vector<16x128xf32>
    %120 = math.exp %119 : vector<16x128xf32>
    %cst_40 = arith.constant 1.000000e+00 : f32
    %121 = vector.broadcast %cst_40 : f32 to vector<16x128xf32>
    %122 = arith.addf %121, %120 : vector<16x128xf32>
    %123 = arith.divf %121, %122 : vector<16x128xf32>
    %124 = vector.extract_strided_slice %117 {offsets = [0, 128], sizes = [16, 128], strides = [1, 1]} : vector<16x512xf32> to vector<16x128xf32>
    %125 = arith.negf %124 : vector<16x128xf32>
    %126 = math.exp %125 : vector<16x128xf32>
    %cst_41 = arith.constant 1.000000e+00 : f32
    %127 = vector.broadcast %cst_41 : f32 to vector<16x128xf32>
    %128 = arith.addf %127, %126 : vector<16x128xf32>
    %129 = arith.divf %127, %128 : vector<16x128xf32>
    %130 = vector.extract_strided_slice %117 {offsets = [0, 256], sizes = [16, 128], strides = [1, 1]} : vector<16x512xf32> to vector<16x128xf32>
    %131 = math.tanh %130 : vector<16x128xf32>
    %132 = vector.extract_strided_slice %117 {offsets = [0, 384], sizes = [16, 128], strides = [1, 1]} : vector<16x512xf32> to vector<16x128xf32>
    %133 = arith.negf %132 : vector<16x128xf32>
    %134 = math.exp %133 : vector<16x128xf32>
    %cst_42 = arith.constant 1.000000e+00 : f32
    %135 = vector.broadcast %cst_42 : f32 to vector<16x128xf32>
    %136 = arith.addf %135, %134 : vector<16x128xf32>
    %137 = arith.divf %135, %136 : vector<16x128xf32>
    %138 = arith.mulf %129, %107 : vector<16x128xf32>
    %139 = arith.mulf %123, %131 : vector<16x128xf32>
    %140 = arith.addf %138, %139 : vector<16x128xf32>
    %141 = math.tanh %140 : vector<16x128xf32>
    %142 = arith.mulf %137, %141 : vector<16x128xf32>
    %143 = arith.truncf %142 : vector<16x128xf32> to vector<16x128xbf16>
    %c3 = arith.constant 3 : index
    %c0_43 = arith.constant 0 : index
    %c0_44 = arith.constant 0 : index
    %144 = vector.load %arg5[%c3, %c0_43, %c0_44] : memref<8x16x128xbf16, #tpu.memory_space<vmem>>, vector<1x16x128xbf16>
    %145 = vector.shape_cast %144 : vector<1x16x128xbf16> to vector<16x128xbf16>
    %146 = vector.shape_cast %143 : vector<16x128xbf16> to vector<1x16x128xbf16>
    tpu.vector_store %arg5[%c3, %c0_43, %c0_44], %146 {strides = array<i32>} : memref<8x16x128xbf16, #tpu.memory_space<vmem>>, vector<1x16x128xbf16>,
    %c64 = arith.constant 64 : index
    %c0_45 = arith.constant 0 : index
    %147 = vector.load %arg8[%c64, %c0_45] : memref<128x512xbf16, #tpu.memory_space<vmem>>, vector<16x512xbf16>
    %cst_46 = arith.constant dense<0.000000e+00> : vector<16x512xf32>
    %148 = tpu.matmul %143, %12, %cst_46 {dimension_numbers = #tpu.dot_dimension_numbers<[1], [0], [0], [1], [0, 0, 1, 1], [], []>} : vector<16x128xbf16>, vector<128x512xbf16>, vector<16x512xf32> -> vector<16x512xf32>
    %149 = arith.extf %147 : vector<16x512xbf16> to vector<16x512xf32>
    %150 = arith.addf %149, %148 : vector<16x512xf32>
    %151 = vector.extract_strided_slice %150 {offsets = [0, 0], sizes = [16, 128], strides = [1, 1]} : vector<16x512xf32> to vector<16x128xf32>
    %152 = arith.negf %151 : vector<16x128xf32>
    %153 = math.exp %152 : vector<16x128xf32>
    %cst_47 = arith.constant 1.000000e+00 : f32
    %154 = vector.broadcast %cst_47 : f32 to vector<16x128xf32>
    %155 = arith.addf %154, %153 : vector<16x128xf32>
    %156 = arith.divf %154, %155 : vector<16x128xf32>
    %157 = vector.extract_strided_slice %150 {offsets = [0, 128], sizes = [16, 128], strides = [1, 1]} : vector<16x512xf32> to vector<16x128xf32>
    %158 = arith.negf %157 : vector<16x128xf32>
    %159 = math.exp %158 : vector<16x128xf32>
    %cst_48 = arith.constant 1.000000e+00 : f32
    %160 = vector.broadcast %cst_48 : f32 to vector<16x128xf32>
    %161 = arith.addf %160, %159 : vector<16x128xf32>
    %162 = arith.divf %160, %161 : vector<16x128xf32>
    %163 = vector.extract_strided_slice %150 {offsets = [0, 256], sizes = [16, 128], strides = [1, 1]} : vector<16x512xf32> to vector<16x128xf32>
    %164 = math.tanh %163 : vector<16x128xf32>
    %165 = vector.extract_strided_slice %150 {offsets = [0, 384], sizes = [16, 128], strides = [1, 1]} : vector<16x512xf32> to vector<16x128xf32>
    %166 = arith.negf %165 : vector<16x128xf32>
    %167 = math.exp %166 : vector<16x128xf32>
    %cst_49 = arith.constant 1.000000e+00 : f32
    %168 = vector.broadcast %cst_49 : f32 to vector<16x128xf32>
    %169 = arith.addf %168, %167 : vector<16x128xf32>
    %170 = arith.divf %168, %169 : vector<16x128xf32>
    %171 = arith.mulf %162, %140 : vector<16x128xf32>
    %172 = arith.mulf %156, %164 : vector<16x128xf32>
    %173 = arith.addf %171, %172 : vector<16x128xf32>
    %174 = math.tanh %173 : vector<16x128xf32>
    %175 = arith.mulf %170, %174 : vector<16x128xf32>
    %176 = arith.truncf %175 : vector<16x128xf32> to vector<16x128xbf16>
    %c4 = arith.constant 4 : index
    %c0_50 = arith.constant 0 : index
    %c0_51 = arith.constant 0 : index
    %177 = vector.load %arg5[%c4, %c0_50, %c0_51] : memref<8x16x128xbf16, #tpu.memory_space<vmem>>, vector<1x16x128xbf16>
    %178 = vector.shape_cast %177 : vector<1x16x128xbf16> to vector<16x128xbf16>
    %179 = vector.shape_cast %176 : vector<16x128xbf16> to vector<1x16x128xbf16>
    tpu.vector_store %arg5[%c4, %c0_50, %c0_51], %179 {strides = array<i32>} : memref<8x16x128xbf16, #tpu.memory_space<vmem>>, vector<1x16x128xbf16>,
    %c80 = arith.constant 80 : index
    %c0_52 = arith.constant 0 : index
    %180 = vector.load %arg8[%c80, %c0_52] : memref<128x512xbf16, #tpu.memory_space<vmem>>, vector<16x512xbf16>
    %cst_53 = arith.constant dense<0.000000e+00> : vector<16x512xf32>
    %181 = tpu.matmul %176, %12, %cst_53 {dimension_numbers = #tpu.dot_dimension_numbers<[1], [0], [0], [1], [0, 0, 1, 1], [], []>} : vector<16x128xbf16>, vector<128x512xbf16>, vector<16x512xf32> -> vector<16x512xf32>
    %182 = arith.extf %180 : vector<16x512xbf16> to vector<16x512xf32>
    %183 = arith.addf %182, %181 : vector<16x512xf32>
    %184 = vector.extract_strided_slice %183 {offsets = [0, 0], sizes = [16, 128], strides = [1, 1]} : vector<16x512xf32> to vector<16x128xf32>
    %185 = arith.negf %184 : vector<16x128xf32>
    %186 = math.exp %185 : vector<16x128xf32>
    %cst_54 = arith.constant 1.000000e+00 : f32
    %187 = vector.broadcast %cst_54 : f32 to vector<16x128xf32>
    %188 = arith.addf %187, %186 : vector<16x128xf32>
    %189 = arith.divf %187, %188 : vector<16x128xf32>
    %190 = vector.extract_strided_slice %183 {offsets = [0, 128], sizes = [16, 128], strides = [1, 1]} : vector<16x512xf32> to vector<16x128xf32>
    %191 = arith.negf %190 : vector<16x128xf32>
    %192 = math.exp %191 : vector<16x128xf32>
    %cst_55 = arith.constant 1.000000e+00 : f32
    %193 = vector.broadcast %cst_55 : f32 to vector<16x128xf32>
    %194 = arith.addf %193, %192 : vector<16x128xf32>
    %195 = arith.divf %193, %194 : vector<16x128xf32>
    %196 = vector.extract_strided_slice %183 {offsets = [0, 256], sizes = [16, 128], strides = [1, 1]} : vector<16x512xf32> to vector<16x128xf32>
    %197 = math.tanh %196 : vector<16x128xf32>
    %198 = vector.extract_strided_slice %183 {offsets = [0, 384], sizes = [16, 128], strides = [1, 1]} : vector<16x512xf32> to vector<16x128xf32>
    %199 = arith.negf %198 : vector<16x128xf32>
    %200 = math.exp %199 : vector<16x128xf32>
    %cst_56 = arith.constant 1.000000e+00 : f32
    %201 = vector.broadcast %cst_56 : f32 to vector<16x128xf32>
    %202 = arith.addf %201, %200 : vector<16x128xf32>
    %203 = arith.divf %201, %202 : vector<16x128xf32>
    %204 = arith.mulf %195, %173 : vector<16x128xf32>
    %205 = arith.mulf %189, %197 : vector<16x128xf32>
    %206 = arith.addf %204, %205 : vector<16x128xf32>
    %207 = math.tanh %206 : vector<16x128xf32>
    %208 = arith.mulf %203, %207 : vector<16x128xf32>
    %209 = arith.truncf %208 : vector<16x128xf32> to vector<16x128xbf16>
    %c5 = arith.constant 5 : index
    %c0_57 = arith.constant 0 : index
    %c0_58 = arith.constant 0 : index
    %210 = vector.load %arg5[%c5, %c0_57, %c0_58] : memref<8x16x128xbf16, #tpu.memory_space<vmem>>, vector<1x16x128xbf16>
    %211 = vector.shape_cast %210 : vector<1x16x128xbf16> to vector<16x128xbf16>
    %212 = vector.shape_cast %209 : vector<16x128xbf16> to vector<1x16x128xbf16>
    tpu.vector_store %arg5[%c5, %c0_57, %c0_58], %212 {strides = array<i32>} : memref<8x16x128xbf16, #tpu.memory_space<vmem>>, vector<1x16x128xbf16>,
    %c96 = arith.constant 96 : index
    %c0_59 = arith.constant 0 : index
    %213 = vector.load %arg8[%c96, %c0_59] : memref<128x512xbf16, #tpu.memory_space<vmem>>, vector<16x512xbf16>
    %cst_60 = arith.constant dense<0.000000e+00> : vector<16x512xf32>
    %214 = tpu.matmul %209, %12, %cst_60 {dimension_numbers = #tpu.dot_dimension_numbers<[1], [0], [0], [1], [0, 0, 1, 1], [], []>} : vector<16x128xbf16>, vector<128x512xbf16>, vector<16x512xf32> -> vector<16x512xf32>
    %215 = arith.extf %213 : vector<16x512xbf16> to vector<16x512xf32>
    %216 = arith.addf %215, %214 : vector<16x512xf32>
    %217 = vector.extract_strided_slice %216 {offsets = [0, 0], sizes = [16, 128], strides = [1, 1]} : vector<16x512xf32> to vector<16x128xf32>
    %218 = arith.negf %217 : vector<16x128xf32>
    %219 = math.exp %218 : vector<16x128xf32>
    %cst_61 = arith.constant 1.000000e+00 : f32
    %220 = vector.broadcast %cst_61 : f32 to vector<16x128xf32>
    %221 = arith.addf %220, %219 : vector<16x128xf32>
    %222 = arith.divf %220, %221 : vector<16x128xf32>
    %223 = vector.extract_strided_slice %216 {offsets = [0, 128], sizes = [16, 128], strides = [1, 1]} : vector<16x512xf32> to vector<16x128xf32>
    %224 = arith.negf %223 : vector<16x128xf32>
    %225 = math.exp %224 : vector<16x128xf32>
    %cst_62 = arith.constant 1.000000e+00 : f32
    %226 = vector.broadcast %cst_62 : f32 to vector<16x128xf32>
    %227 = arith.addf %226, %225 : vector<16x128xf32>
    %228 = arith.divf %226, %227 : vector<16x128xf32>
    %229 = vector.extract_strided_slice %216 {offsets = [0, 256], sizes = [16, 128], strides = [1, 1]} : vector<16x512xf32> to vector<16x128xf32>
    %230 = math.tanh %229 : vector<16x128xf32>
    %231 = vector.extract_strided_slice %216 {offsets = [0, 384], sizes = [16, 128], strides = [1, 1]} : vector<16x512xf32> to vector<16x128xf32>
    %232 = arith.negf %231 : vector<16x128xf32>
    %233 = math.exp %232 : vector<16x128xf32>
    %cst_63 = arith.constant 1.000000e+00 : f32
    %234 = vector.broadcast %cst_63 : f32 to vector<16x128xf32>
    %235 = arith.addf %234, %233 : vector<16x128xf32>
    %236 = arith.divf %234, %235 : vector<16x128xf32>
    %237 = arith.mulf %228, %206 : vector<16x128xf32>
    %238 = arith.mulf %222, %230 : vector<16x128xf32>
    %239 = arith.addf %237, %238 : vector<16x128xf32>
    %240 = math.tanh %239 : vector<16x128xf32>
    %241 = arith.mulf %236, %240 : vector<16x128xf32>
    %242 = arith.truncf %241 : vector<16x128xf32> to vector<16x128xbf16>
    %c6 = arith.constant 6 : index
    %c0_64 = arith.constant 0 : index
    %c0_65 = arith.constant 0 : index
    %243 = vector.load %arg5[%c6, %c0_64, %c0_65] : memref<8x16x128xbf16, #tpu.memory_space<vmem>>, vector<1x16x128xbf16>
    %244 = vector.shape_cast %243 : vector<1x16x128xbf16> to vector<16x128xbf16>
    %245 = vector.shape_cast %242 : vector<16x128xbf16> to vector<1x16x128xbf16>
    tpu.vector_store %arg5[%c6, %c0_64, %c0_65], %245 {strides = array<i32>} : memref<8x16x128xbf16, #tpu.memory_space<vmem>>, vector<1x16x128xbf16>,
    %c112 = arith.constant 112 : index
    %c0_66 = arith.constant 0 : index
    %246 = vector.load %arg8[%c112, %c0_66] : memref<128x512xbf16, #tpu.memory_space<vmem>>, vector<16x512xbf16>
    %cst_67 = arith.constant dense<0.000000e+00> : vector<16x512xf32>
    %247 = tpu.matmul %242, %12, %cst_67 {dimension_numbers = #tpu.dot_dimension_numbers<[1], [0], [0], [1], [0, 0, 1, 1], [], []>} : vector<16x128xbf16>, vector<128x512xbf16>, vector<16x512xf32> -> vector<16x512xf32>
    %248 = arith.extf %246 : vector<16x512xbf16> to vector<16x512xf32>
    %249 = arith.addf %248, %247 : vector<16x512xf32>
    %250 = vector.extract_strided_slice %249 {offsets = [0, 0], sizes = [16, 128], strides = [1, 1]} : vector<16x512xf32> to vector<16x128xf32>
    %251 = arith.negf %250 : vector<16x128xf32>
    %252 = math.exp %251 : vector<16x128xf32>
    %cst_68 = arith.constant 1.000000e+00 : f32
    %253 = vector.broadcast %cst_68 : f32 to vector<16x128xf32>
    %254 = arith.addf %253, %252 : vector<16x128xf32>
    %255 = arith.divf %253, %254 : vector<16x128xf32>
    %256 = vector.extract_strided_slice %249 {offsets = [0, 128], sizes = [16, 128], strides = [1, 1]} : vector<16x512xf32> to vector<16x128xf32>
    %257 = arith.negf %256 : vector<16x128xf32>
    %258 = math.exp %257 : vector<16x128xf32>
    %cst_69 = arith.constant 1.000000e+00 : f32
    %259 = vector.broadcast %cst_69 : f32 to vector<16x128xf32>
    %260 = arith.addf %259, %258 : vector<16x128xf32>
    %261 = arith.divf %259, %260 : vector<16x128xf32>
    %262 = vector.extract_strided_slice %249 {offsets = [0, 256], sizes = [16, 128], strides = [1, 1]} : vector<16x512xf32> to vector<16x128xf32>
    %263 = math.tanh %262 : vector<16x128xf32>
    %264 = vector.extract_strided_slice %249 {offsets = [0, 384], sizes = [16, 128], strides = [1, 1]} : vector<16x512xf32> to vector<16x128xf32>
    %265 = arith.negf %264 : vector<16x128xf32>
    %266 = math.exp %265 : vector<16x128xf32>
    %cst_70 = arith.constant 1.000000e+00 : f32
    %267 = vector.broadcast %cst_70 : f32 to vector<16x128xf32>
    %268 = arith.addf %267, %266 : vector<16x128xf32>
    %269 = arith.divf %267, %268 : vector<16x128xf32>
    %270 = arith.mulf %261, %239 : vector<16x128xf32>
    %271 = arith.mulf %255, %263 : vector<16x128xf32>
    %272 = arith.addf %270, %271 : vector<16x128xf32>
    %273 = math.tanh %272 : vector<16x128xf32>
    %274 = arith.mulf %269, %273 : vector<16x128xf32>
    %275 = arith.truncf %274 : vector<16x128xf32> to vector<16x128xbf16>
    %c7 = arith.constant 7 : index
    %c0_71 = arith.constant 0 : index
    %c0_72 = arith.constant 0 : index
    %276 = vector.load %arg5[%c7, %c0_71, %c0_72] : memref<8x16x128xbf16, #tpu.memory_space<vmem>>, vector<1x16x128xbf16>
    %277 = vector.shape_cast %276 : vector<1x16x128xbf16> to vector<16x128xbf16>
    %278 = vector.shape_cast %275 : vector<16x128xbf16> to vector<1x16x128xbf16>
    tpu.vector_store %arg5[%c7, %c0_71, %c0_72], %278 {strides = array<i32>} : memref<8x16x128xbf16, #tpu.memory_space<vmem>>, vector<1x16x128xbf16>,
    %c0_73 = arith.constant 0 : index
    %c0_74 = arith.constant 0 : index
    %279 = vector.load %arg6[%c0_73, %c0_74] : memref<16x128xbf16, #tpu.memory_space<vmem>>, vector<16x128xbf16>
    tpu.vector_store %arg6[%c0_73, %c0_74], %275 {strides = array<i32>} : memref<16x128xbf16, #tpu.memory_space<vmem>>, vector<16x128xbf16>,
    %c0_75 = arith.constant 0 : index
    %c0_76 = arith.constant 0 : index
    %280 = vector.load %arg7[%c0_75, %c0_76] : memref<16x128xf32, #tpu.memory_space<vmem>>, vector<16x128xf32>
    tpu.vector_store %arg7[%c0_75, %c0_76], %272 {strides = array<i32>} : memref<16x128xf32, #tpu.memory_space<vmem>>, vector<16x128xf32>,
    return
  }
  func.func @transform_0(%arg0: i32) -> (i32, i32, i32) {
    %c0_i32 = arith.constant 0 : i32
    %c0_i32_0 = arith.constant 0 : i32
    %c0_i32_1 = arith.constant 0 : i32
    return %arg0, %c0_i32, %c0_i32_0 : i32, i32, i32
  }
  func.func @transform_1(%arg0: i32) -> (i32, i32) {
    %c0_i32 = arith.constant 0 : i32
    %c0_i32_0 = arith.constant 0 : i32
    %c0_i32_1 = arith.constant 0 : i32
    return %c0_i32, %c0_i32_0 : i32, i32
  }
  func.func @transform_2(%arg0: i32) -> (i32, i32) {
    %c0_i32 = arith.constant 0 : i32
    %c0_i32_0 = arith.constant 0 : i32
    %c0_i32_1 = arith.constant 0 : i32
    return %c0_i32, %c0_i32_0 : i32, i32
  }
  func.func @transform_3(%arg0: i32) -> (i32, i32) {
    %c0_i32 = arith.constant 0 : i32
    %c0_i32_0 = arith.constant 0 : i32
    %c0_i32_1 = arith.constant 0 : i32
    return %c0_i32, %c0_i32_0 : i32, i32
  }
  func.func @transform_4(%arg0: i32) -> (i32, i32, i32) {
    %c0_i32 = arith.constant 0 : i32
    %c0_i32_0 = arith.constant 0 : i32
    %c0_i32_1 = arith.constant 0 : i32
    return %arg0, %c0_i32, %c0_i32_0 : i32, i32, i32
  }
}

module attributes {stable_mosaic.version = 11 : i64} {
  func.func @_vocab_proj_kernel(%arg0: i32, %arg1: i32, %arg2: memref<16x128xbf16, #tpu.memory_space<vmem>>, %arg3: memref<128x128xbf16, #tpu.memory_space<vmem>>, %arg4: memref<1x128xf32, #tpu.memory_space<vmem>>, %arg5: memref<16x128xf32, #tpu.memory_space<vmem>>) attributes {dimension_semantics = [#tpu.dimension_semantics<parallel>, #tpu.dimension_semantics<parallel>], iteration_bounds = array<i64: 1, 1>, scalar_prefetch = 0 : i64, scratch_operands = 0 : i64, tpu.core_type = #tpu.core_type<tc>, window_params = [{transform_indices = @transform_0, window_bounds = array<i64: 16, 128>}, {transform_indices = @transform_1, window_bounds = array<i64: 128, 128>}, {transform_indices = @transform_2, window_bounds = array<i64: 1, 128>}, {transform_indices = @transform_3, window_bounds = array<i64: 16, 128>}]} {
    %c0 = arith.constant 0 : index
    %c0_0 = arith.constant 0 : index
    %0 = vector.load %arg2[%c0, %c0_0] : memref<16x128xbf16, #tpu.memory_space<vmem>>, vector<16x128xbf16>
    %c0_1 = arith.constant 0 : index
    %c0_2 = arith.constant 0 : index
    %1 = vector.load %arg3[%c0_1, %c0_2] : memref<128x128xbf16, #tpu.memory_space<vmem>>, vector<128x128xbf16>
    %cst = arith.constant dense<0.000000e+00> : vector<16x128xf32>
    %2 = tpu.matmul %0, %1, %cst {dimension_numbers = #tpu.dot_dimension_numbers<[1], [0], [0], [1], [0, 0, 1, 1], [], []>} : vector<16x128xbf16>, vector<128x128xbf16>, vector<16x128xf32> -> vector<16x128xf32>
    %c0_3 = arith.constant 0 : index
    %c0_4 = arith.constant 0 : index
    %3 = vector.load %arg4[%c0_3, %c0_4] : memref<1x128xf32, #tpu.memory_space<vmem>>, vector<1x128xf32>
    %4 = vector.broadcast %3 : vector<1x128xf32> to vector<16x128xf32>
    %5 = arith.addf %2, %4 : vector<16x128xf32>
    %c0_5 = arith.constant 0 : index
    %c0_6 = arith.constant 0 : index
    %6 = vector.load %arg5[%c0_5, %c0_6] : memref<16x128xf32, #tpu.memory_space<vmem>>, vector<16x128xf32>
    tpu.vector_store %arg5[%c0_5, %c0_6], %5 {strides = array<i32>} : memref<16x128xf32, #tpu.memory_space<vmem>>, vector<16x128xf32>,
    return
  }
  func.func @transform_0(%arg0: i32, %arg1: i32) -> (i32, i32) {
    %c0_i32 = arith.constant 0 : i32
    %c0_i32_0 = arith.constant 0 : i32
    return %arg0, %c0_i32 : i32, i32
  }
  func.func @transform_1(%arg0: i32, %arg1: i32) -> (i32, i32) {
    %c0_i32 = arith.constant 0 : i32
    %c0_i32_0 = arith.constant 0 : i32
    return %c0_i32, %arg1 : i32, i32
  }
  func.func @transform_2(%arg0: i32, %arg1: i32) -> (i32, i32) {
    %c0_i32 = arith.constant 0 : i32
    %c0_i32_0 = arith.constant 0 : i32
    return %c0_i32, %arg1 : i32, i32
  }
  func.func @transform_3(%arg0: i32, %arg1: i32) -> (i32, i32) {
    %c0_i32 = arith.constant 0 : i32
    return %arg0, %arg1 : i32, i32
  }
}

</mosaic_0001>

<llo_original>
// kernel: lm_lstm_forward.3
$region0: #{lm_lstm_forward.3}
  #allocation0 [shape = 'u32[]', space=smem, size = 0x4, offset = 0x4, fixed_abs, tag = 'smem constant byte address 0x4 - core index']
  #allocation1 [shape = 'u32[144,128]{1,0:T(1,128)}', space=vmem, size = 0x12000, scoped, tag = 'internal scratch']
  %s0 = inlined_call_operand.hbm [shape: bf16[16,128], index: 0, kind: input, shape index: {}]
  %s1 = inlined_call_operand.hbm [shape: bf16[128,128], index: 1, kind: input, shape index: {}]
  %s2 = inlined_call_operand.hbm [shape: f32[1,128], index: 2, kind: input, shape index: {}]
  %s3 = inlined_call_operand.hbm [shape: f32[16,128], index: 3, kind: output, shape index: {}]
  %s4 = sld [smem:[#allocation0]]
  $region34: #{lm_lstm_forward.3} parent=0
    _
  %s6 = ssub.s32 1, %s4
  %s7 = scalar_select 0, %s6, %s4
  $region1: #{lm_lstm_forward.3} parent=0
    #allocation2 [shape = 'u8[4096]{0}', space=vmem, size = 0x1000, scoped, tag = 'input window, operand 0, single buffered']
    #allocation3 [shape = 's32[1]{0}', space=sflag, size = 0x4, scoped, tag = 'scoped memory for lm_lstm_forward.3']
    #allocation4 [shape = 's32[1]{0}', space=sflag, size = 0x4, scoped, tag = 'scoped memory for lm_lstm_forward.3']
    #allocation5 [shape = 'u8[32768]{0}', space=vmem, size = 0x8000, scoped, tag = 'input window, operand 1, single buffered']
    #allocation6 [shape = 's32[1]{0}', space=sflag, size = 0x4, scoped, tag = 'scoped memory for lm_lstm_forward.3']
    #allocation7 [shape = 'u8[512]{0}', space=vmem, size = 0x400, scoped, tag = 'input window, operand 2, single buffered']
    #allocation8 [shape = 'u8[8192]{0}', space=vmem, size = 0x2000, scoped, tag = 'output window, operand 0, single buffered']
    %8 = vsyncpa [#allocation3], 0
    %9 = vsyncpa [#allocation6], 0
    %10 = vsyncpa [#allocation4], 0
    // Predicated region
    $region2: #{lm_lstm_forward.3} parent=1 // pred_check
      _
    $region3: #{lm_lstm_forward.3} parent=1 // pred_check_branch
      %12 = sbr.rel (0) target = $region5
    $region4: #{lm_lstm_forward.3} parent=1 // pred_region
      %s14 = ssub.s32 128, 128
      %15 = vsyncadd [#allocation3], %s14
      %s16 = sshll.u32 [#allocation2], 4
      %s17 = int_to_ptr.vmem [resolvable:$true] %s16
      %22 = dma.hbm_to_vmem [thread:$0]  %s0, 128, %s17, [#allocation3], 64, 64, 4
    $region5: #{lm_lstm_forward.3} parent=1 // pred_fallthru
      _
    // Predicated region
    $region6: #{lm_lstm_forward.3} parent=1 // pred_check
      _
    $region7: #{lm_lstm_forward.3} parent=1 // pred_check_branch
      %24 = sbr.rel (0) target = $region9
    $region8: #{lm_lstm_forward.3} parent=1 // pred_region
      %s26 = ssub.s32 1024, 1024
      %27 = vsyncadd [#allocation6], %s26
      %s28 = sshll.u32 [#allocation5], 4
      %s29 = int_to_ptr.vmem [resolvable:$true] %s28
      %34 = dma.hbm_to_vmem [thread:$0]  %s1, 1024, %s29, [#allocation6], 64, 64, 4
    $region9: #{lm_lstm_forward.3} parent=1 // pred_fallthru
      _
    // Predicated region
    $region10: #{lm_lstm_forward.3} parent=1 // pred_check
      _
    $region11: #{lm_lstm_forward.3} parent=1 // pred_check_branch
      %36 = sbr.rel (0) target = $region13
    $region12: #{lm_lstm_forward.3} parent=1 // pred_region
      %s38 = ssub.s32 16, 16
      %39 = vsyncadd [#allocation6], %s38
      %s41 = sshll.u32 [#allocation7], 4
      %s42 = int_to_ptr.vmem [resolvable:$true] %s41
      %44 = dma.hbm_to_vmem [thread:$0]  %s2, 16, %s42, [#allocation6]
    $region13: #{lm_lstm_forward.3} parent=1 // pred_fallthru
      _
    // Predicated region
    $region14: #{lm_lstm_forward.3} parent=1 // pred_check
      _
    $region15: #{lm_lstm_forward.3} parent=1 // pred_check_branch
      %46 = sbr.rel (0) target = $region17
    $region16: #{lm_lstm_forward.3} parent=1 // pred_region
      %47 = dma.done [#allocation3], 128
    $region17: #{lm_lstm_forward.3} parent=1 // pred_fallthru
      _
    // Predicated region
    $region18: #{lm_lstm_forward.3} parent=1 // pred_check
      _
    $region19: #{lm_lstm_forward.3} parent=1 // pred_check_branch
      %49 = sbr.rel (0) target = $region21
    $region20: #{lm_lstm_forward.3} parent=1 // pred_region
      %50 = dma.done [#allocation6], 1024
    $region21: #{lm_lstm_forward.3} parent=1 // pred_fallthru
      _
    // Predicated region
    $region22: #{lm_lstm_forward.3} parent=1 // pred_check
      _
    $region23: #{lm_lstm_forward.3} parent=1 // pred_check_branch
      %52 = sbr.rel (0) target = $region25
    $region24: #{lm_lstm_forward.3} parent=1 // pred_region
      %53 = dma.done [#allocation6], 16
    $region25: #{lm_lstm_forward.3} parent=1 // pred_fallthru
      _
    %v55 = vld [vmem:[#allocation2] sm:$0xf]
    %v56 = vld [vmem:[#allocation2 + $0x4] sm:$0xf]
    %v57 = vld [vmem:[#allocation5] sm:$0xf]
    %v58 = vld [vmem:[#allocation5 + $0x4] sm:$0xf]
    %v59 = vld [vmem:[#allocation5 + $0x8] sm:$0xf]
    %v60 = vld [vmem:[#allocation5 + $0xc] sm:$0xf]
    %v61 = vld [vmem:[#allocation5 + $0x10] sm:$0xf]
    %v62 = vld [vmem:[#allocation5 + $0x14] sm:$0xf]
    %v63 = vld [vmem:[#allocation5 + $0x18] sm:$0xf]
    %v64 = vld [vmem:[#allocation5 + $0x1c] sm:$0xf]
    %v65 = vld [vmem:[#allocation5 + $0x20] sm:$0xf]
    %v66 = vld [vmem:[#allocation5 + $0x24] sm:$0xf]
    %v67 = vld [vmem:[#allocation5 + $0x28] sm:$0xf]
    %v68 = vld [vmem:[#allocation5 + $0x2c] sm:$0xf]
    %v69 = vld [vmem:[#allocation5 + $0x30] sm:$0xf]
    %v70 = vld [vmem:[#allocation5 + $0x34] sm:$0xf]
    %v71 = vld [vmem:[#allocation5 + $0x38] sm:$0xf]
    %v72 = vld [vmem:[#allocation5 + $0x3c] sm:$0xf]
    %v73 = vld [vmem:[#allocation7] sm:$0x1]
    %v75 = vlaneseq
    %v76 = vshrl.u32 %v75, 7
    %v77 = vsub.s32 0, %v76
    %v78 = vrot.slane %v73, %v77
    %v82 = vunpack.c.l.b16 %v55
    %v83 = vunpack.c.l.b16 %v56
    %v84 = vpack.c.b16 %v83, %v82
    %v102 = vunpack.c.l.b16 %v57
    %v103 = vunpack.c.l.b16 %v58
    %v104 = vunpack.c.l.b16 %v59
    %v105 = vunpack.c.l.b16 %v60
    %v106 = vunpack.c.l.b16 %v61
    %v107 = vunpack.c.l.b16 %v62
    %v108 = vunpack.c.l.b16 %v63
    %v109 = vunpack.c.l.b16 %v64
    %v110 = vunpack.c.l.b16 %v65
    %v111 = vunpack.c.l.b16 %v66
    %v112 = vunpack.c.l.b16 %v67
    %v113 = vunpack.c.l.b16 %v68
    %v114 = vunpack.c.l.b16 %v69
    %v115 = vunpack.c.l.b16 %v70
    %v116 = vunpack.c.l.b16 %v71
    %v117 = vunpack.c.l.b16 %v72
    %v118 = vpack.c.b16 %v103, %v102
    %v119 = vpack.c.b16 %v105, %v104
    %v120 = vpack.c.b16 %v107, %v106
    %v121 = vpack.c.b16 %v109, %v108
    %v122 = vpack.c.b16 %v111, %v110
    %v123 = vpack.c.b16 %v113, %v112
    %v124 = vpack.c.b16 %v115, %v114
    %v125 = vpack.c.b16 %v117, %v116
    %134 = vmatprep.subr.bf16.mxu0 0
    %135 = vmatpush1.bf16.msra.mxu0 %v118
    %136 = vmatprep.subr.bf16.mxu0 0
    %137 = vmatpush1.bf16.msra.mxu0 %v119
    %138 = vmatprep.subr.bf16.mxu0 0
    %139 = vmatpush1.bf16.msra.mxu0 %v120
    %140 = vmatprep.subr.bf16.mxu0 0
    %141 = vmatpush1.bf16.msra.mxu0 %v121
    %142 = vmatprep.subr.bf16.mxu0 0
    %143 = vmatpush1.bf16.msra.mxu0 %v122
    %144 = vmatprep.subr.bf16.mxu0 0
    %145 = vmatpush1.bf16.msra.mxu0 %v123
    %146 = vmatprep.subr.bf16.mxu0 0
    %147 = vmatpush1.bf16.msra.mxu0 %v124
    %148 = vmatprep.subr.bf16.mxu0 0
    %149 = vmatpush1.bf16.msra.mxu0 %v125
    %150 = vmatprep.subr.bf16.mxu0 0
    %151 = vmatpush1.bf16.msra.mxu0 0
    %152 = vmatprep.subr.bf16.mxu0 0
    %153 = vmatpush1.bf16.msra.mxu0 0
    %154 = vmatprep.subr.bf16.mxu0 0
    %155 = vmatpush1.bf16.msra.mxu0 0
    %156 = vmatprep.subr.bf16.mxu0 0
    %157 = vmatpush1.bf16.msra.mxu0 0
    %158 = vmatprep.subr.bf16.mxu0 0
    %159 = vmatpush1.bf16.msra.mxu0 0
    %160 = vmatprep.subr.bf16.mxu0 0
    %161 = vmatpush1.bf16.msra.mxu0 0
    %162 = vmatprep.subr.bf16.mxu0 0
    %163 = vmatpush1.bf16.msra.mxu0 0
    %164 = vmatprep.subr.bf16.mxu0 0
    %165 = vmatpush1.bf16.msra.mxu0 0
    %166 = vmatprep.mubr.bf16.mxu0 0
    %167 = vmatmul.mubr.bf16.gmra.mrb[0].mxu0 %v84
    %v168 = vpop.f32.mrb[0].mxu0
    %v169 = vadd.f32 %v78, %v168
    %v170 = vpop.f32.mrb[0].mxu0
    %v171 = vpop.f32.mrb[0].mxu0
    %v172 = vadd.f32 %v78, %v171
    %v173 = vpop.f32.mrb[0].mxu0
    %174 = vdwg.mxu0
    %175 = vst [vmem:[#allocation8] sm:$0xff] %v169
    %176 = vst [vmem:[#allocation8 + $0x8] sm:$0xff] %v172
    // Predicated region
    $region26: #{lm_lstm_forward.3} parent=1 // pred_check
      _
    $region27: #{lm_lstm_forward.3} parent=1 // pred_check_branch
      %178 = sbr.rel (0) target = $region29
    $region28: #{lm_lstm_forward.3} parent=1 // pred_region
      %s180 = ssub.s32 256, 256
      %181 = vsyncadd [#allocation4], %s180
      %s182 = sshll.u32 [#allocation8], 4
      %s183 = int_to_ptr.vmem [resolvable:$true] %s182
      %188 = dma.vmem_to_hbm [thread:$0]  %s183, 256, %s3, [#allocation4], 128, 128, 8
    $region29: #{lm_lstm_forward.3} parent=1 // pred_fallthru
      _
    // Predicated region
    $region30: #{lm_lstm_forward.3} parent=1 // pred_check
      _
    $region31: #{lm_lstm_forward.3} parent=1 // pred_check_branch
      %190 = sbr.rel (0) target = $region33
    $region32: #{lm_lstm_forward.3} parent=1 // pred_region
      %191 = dma.done [#allocation4], 256
    $region33: #{lm_lstm_forward.3} parent=1 // pred_fallthru
      _
    %192 = vsyncpa [#allocation3], 1
    %193 = vsyncpa [#allocation6], 1
    %194 = vsyncpa [#allocation4], 1

// kernel: lm_lstm_forward.2
$region0: #{lm_lstm_forward.2}
  #allocation0 [shape = 'u32[]', space=smem, size = 0x4, offset = 0x4, fixed_abs, tag = 'smem constant byte address 0x4 - core index']
  #allocation1 [shape = 'u32[144,128]{1,0:T(1,128)}', space=vmem, size = 0x12000, scoped, tag = 'internal scratch']
  #allocation2 [shape = 'bf16[16,128]{1,0:T(16,128)(2,1)}', space=vmem, size = 0x1000, scoped, tag = 'scratch operand']
  #allocation3 [shape = 'f32[16,128]{1,0:T(8,128)}', space=vmem, size = 0x2000, scoped, tag = 'scratch operand']
  #allocation4 [shape = 'bf16[128,512]{1,0:T(16,128)(2,1)}', space=vmem, size = 0x20000, scoped, tag = 'scratch operand']
  %s0 = inlined_call_operand.hbm [shape: bf16[8,16,128], index: 0, kind: input, shape index: {}]
  %s1 = inlined_call_operand.hbm [shape: bf16[128,512], index: 1, kind: input, shape index: {}]
  %s2 = inlined_call_operand.hbm [shape: bf16[128,512], index: 2, kind: input, shape index: {}]
  %s3 = inlined_call_operand.hbm [shape: f32[1,512], index: 3, kind: input, shape index: {}]
  %s4 = inlined_call_operand.hbm [shape: bf16[8,16,128], index: 4, kind: output, shape index: {}]
  %s5 = sld [smem:[#allocation0]]
  $region46: #{lm_lstm_forward.2} parent=0
    _
  %s7 = ssub.s32 1, %s5
  %s8 = scalar_select 0, %s7, %s5
  $region1: #{lm_lstm_forward.2} parent=0
    #allocation5 [shape = 'u8[32768]{0}', space=vmem, size = 0x8000, scoped, tag = 'input window, operand 0, single buffered']
    #allocation6 [shape = 's32[1]{0}', space=sflag, size = 0x4, scoped, tag = 'scoped memory for lm_lstm_forward.2']
    #allocation7 [shape = 's32[1]{0}', space=sflag, size = 0x4, scoped, tag = 'scoped memory for lm_lstm_forward.2']
    #allocation8 [shape = 'u8[131072]{0}', space=vmem, size = 0x20000, scoped, tag = 'input window, operand 1, single buffered']
    #allocation9 [shape = 's32[1]{0}', space=sflag, size = 0x4, scoped, tag = 'scoped memory for lm_lstm_forward.2']
    #allocation10 [shape = 'u8[131072]{0}', space=vmem, size = 0x20000, scoped, tag = 'input window, operand 2, single buffered']
    #allocation11 [shape = 'u8[2048]{0}', space=vmem, size = 0x800, scoped, tag = 'input window, operand 3, single buffered']
    #allocation12 [shape = 's32[1]{0}', space=sflag, size = 0x4, scoped, tag = 'scoped memory for lm_lstm_forward.2']
    #allocation13 [shape = 'u8[32768]{0}', space=vmem, size = 0x8000, scoped, tag = 'output window, operand 0, single buffered']
    %9 = vsyncpa [#allocation6], 0
    %10 = vsyncpa [#allocation9], 0
    %11 = vsyncpa [#allocation12], 0
    %12 = vsyncpa [#allocation7], 0
    // Predicated region
    $region2: #{lm_lstm_forward.2} parent=1 // pred_check
      _
    $region3: #{lm_lstm_forward.2} parent=1 // pred_check_branch
      %14 = sbr.rel (0) target = $region5
    $region4: #{lm_lstm_forward.2} parent=1 // pred_region
      %s16 = ssub.s32 1024, 1024
      %17 = vsyncadd [#allocation6], %s16
      %s18 = sshll.u32 [#allocation5], 4
      %s19 = int_to_ptr.vmem [resolvable:$true] %s18
      %24 = dma.hbm_to_vmem [thread:$0]  %s0, 1024, %s19, [#allocation6], 64, 64, 4
    $region5: #{lm_lstm_forward.2} parent=1 // pred_fallthru
      _
    // Predicated region
    $region6: #{lm_lstm_forward.2} parent=1 // pred_check
      _
    $region7: #{lm_lstm_forward.2} parent=1 // pred_check_branch
      %26 = sbr.rel (0) target = $region9
    $region8: #{lm_lstm_forward.2} parent=1 // pred_region
      %s28 = ssub.s32 4096, 4096
      %29 = vsyncadd [#allocation9], %s28
      %s30 = sshll.u32 [#allocation8], 4
      %s31 = int_to_ptr.vmem [resolvable:$true] %s30
      %36 = dma.hbm_to_vmem [thread:$0]  %s1, 4096, %s31, [#allocation9], 256, 256, 16
    $region9: #{lm_lstm_forward.2} parent=1 // pred_fallthru
      _
    // Predicated region
    $region10: #{lm_lstm_forward.2} parent=1 // pred_check
      _
    $region11: #{lm_lstm_forward.2} parent=1 // pred_check_branch
      %38 = sbr.rel (0) target = $region13
    $region12: #{lm_lstm_forward.2} parent=1 // pred_region
      %s40 = ssub.s32 4096, 4096
      %41 = vsyncadd [#allocation9], %s40
      %s42 = sshll.u32 [#allocation10], 4
      %s43 = int_to_ptr.vmem [resolvable:$true] %s42
      %48 = dma.hbm_to_vmem [thread:$0]  %s2, 4096, %s43, [#allocation9], 256, 256, 16
    $region13: #{lm_lstm_forward.2} parent=1 // pred_fallthru
      _
    // Predicated region
    $region14: #{lm_lstm_forward.2} parent=1 // pred_check
      _
    $region15: #{lm_lstm_forward.2} parent=1 // pred_check_branch
      %50 = sbr.rel (0) target = $region17
    $region16: #{lm_lstm_forward.2} parent=1 // pred_region
      %s52 = ssub.s32 64, 64
      %53 = vsyncadd [#allocation12], %s52
      %s55 = sshll.u32 [#allocation11], 4
      %s56 = int_to_ptr.vmem [resolvable:$true] %s55
      %58 = dma.hbm_to_vmem [thread:$0]  %s3, 64, %s56, [#allocation12]
    $region17: #{lm_lstm_forward.2} parent=1 // pred_fallthru
      _
    // Predicated region
    $region18: #{lm_lstm_forward.2} parent=1 // pred_check
      _
    $region19: #{lm_lstm_forward.2} parent=1 // pred_check_branch
      %60 = sbr.rel (0) target = $region21
    $region20: #{lm_lstm_forward.2} parent=1 // pred_region
      %61 = dma.done [#allocation6], 1024
    $region21: #{lm_lstm_forward.2} parent=1 // pred_fallthru
      _
    // Predicated region
    $region22: #{lm_lstm_forward.2} parent=1 // pred_check
      _
    $region23: #{lm_lstm_forward.2} parent=1 // pred_check_branch
      %63 = sbr.rel (0) target = $region25
    $region24: #{lm_lstm_forward.2} parent=1 // pred_region
      %64 = dma.done [#allocation9], 4096
    $region25: #{lm_lstm_forward.2} parent=1 // pred_fallthru
      _
    // Predicated region
    $region26: #{lm_lstm_forward.2} parent=1 // pred_check
      _
    $region27: #{lm_lstm_forward.2} parent=1 // pred_check_branch
      %66 = sbr.rel (0) target = $region29
    $region28: #{lm_lstm_forward.2} parent=1 // pred_region
      %67 = dma.done [#allocation9], 4096
    $region29: #{lm_lstm_forward.2} parent=1 // pred_fallthru
      _
    // Predicated region
    $region30: #{lm_lstm_forward.2} parent=1 // pred_check
      _
    $region31: #{lm_lstm_forward.2} parent=1 // pred_check_branch
      %69 = sbr.rel (0) target = $region33
    $region32: #{lm_lstm_forward.2} parent=1 // pred_region
      %70 = dma.done [#allocation12], 64
    $region33: #{lm_lstm_forward.2} parent=1 // pred_fallthru
      _
    %p72 = scmp.eq.s32.totalorder 0, 0
    // Predicated region
    $region34: #{lm_lstm_forward.2} parent=1 // pred_check
      %p73 = pneg %p72
    $region35: #{lm_lstm_forward.2} parent=1 // pred_check_branch
      %75 = sbr.rel (%p73) target = $region37
    $region36: #{lm_lstm_forward.2} parent=1 // pred_region
      %76 = vst [vmem:[#allocation2] sm:$0xff] 0
      %77 = vst [vmem:[#allocation3] sm:$0xff] 0.0
      %78 = vst [vmem:[#allocation3 + $0x8] sm:$0xff] 0.0
    $region37: #{lm_lstm_forward.2} parent=1 // pred_fallthru
      _
    %v79 = vld [vmem:[#allocation5] sm:$0xf]
    %v80 = vld [vmem:[#allocation5 + $0x4] sm:$0xf]
    %v81 = vld [vmem:[#allocation5 + $0x8] sm:$0xf]
    %v82 = vld [vmem:[#allocation5 + $0xc] sm:$0xf]
    %v83 = vld [vmem:[#allocation5 + $0x10] sm:$0xf]
    %v84 = vld [vmem:[#allocation5 + $0x14] sm:$0xf]
    %v85 = vld [vmem:[#allocation5 + $0x18] sm:$0xf]
    %v86 = vld [vmem:[#allocation5 + $0x1c] sm:$0xf]
    %v87 = vld [vmem:[#allocation5 + $0x20] sm:$0xf]
    %v88 = vld [vmem:[#allocation5 + $0x24] sm:$0xf]
    %v89 = vld [vmem:[#allocation5 + $0x28] sm:$0xf]
    %v90 = vld [vmem:[#allocation5 + $0x2c] sm:$0xf]
    %v91 = vld [vmem:[#allocation5 + $0x30] sm:$0xf]
    %v92 = vld [vmem:[#allocation5 + $0x34] sm:$0xf]
    %v93 = vld [vmem:[#allocation5 + $0x38] sm:$0xf]
    %v94 = vld [vmem:[#allocation5 + $0x3c] sm:$0xf]
    %v95 = vld [vmem:[#allocation8] sm:$0xff]
    %v96 = vld [vmem:[#allocation8 + $0x8] sm:$0xff]
    %v97 = vld [vmem:[#allocation8 + $0x10] sm:$0xff]
    %v98 = vld [vmem:[#allocation8 + $0x18] sm:$0xff]
    %v99 = vld [vmem:[#allocation8 + $0x20] sm:$0xff]
    %v100 = vld [vmem:[#allocation8 + $0x28] sm:$0xff]
    %v101 = vld [vmem:[#allocation8 + $0x30] sm:$0xff]
    %v102 = vld [vmem:[#allocation8 + $0x38] sm:$0xff]
    %v103 = vld [vmem:[#allocation8 + $0x40] sm:$0xff]
    %v104 = vld [vmem:[#allocation8 + $0x48] sm:$0xff]
    %v105 = vld [vmem:[#allocation8 + $0x50] sm:$0xff]
    %v106 = vld [vmem:[#allocation8 + $0x58] sm:$0xff]
    %v107 = vld [vmem:[#allocation8 + $0x60] sm:$0xff]
    %v108 = vld [vmem:[#allocation8 + $0x68] sm:$0xff]
    %v109 = vld [vmem:[#allocation8 + $0x70] sm:$0xff]
    %v110 = vld [vmem:[#allocation8 + $0x78] sm:$0xff]
    %v111 = vld [vmem:[#allocation8 + $0x80] sm:$0xff]
    %v112 = vld [vmem:[#allocation8 + $0x88] sm:$0xff]
    %v113 = vld [vmem:[#allocation8 + $0x90] sm:$0xff]
    %v114 = vld [vmem:[#allocation8 + $0x98] sm:$0xff]
    %v115 = vld [vmem:[#allocation8 + $0xa0] sm:$0xff]
    %v116 = vld [vmem:[#allocation8 + $0xa8] sm:$0xff]
    %v117 = vld [vmem:[#allocation8 + $0xb0] sm:$0xff]
    %v118 = vld [vmem:[#allocation8 + $0xb8] sm:$0xff]
    %v119 = vld [vmem:[#allocation8 + $0xc0] sm:$0xff]
    %v120 = vld [vmem:[#allocation8 + $0xc8] sm:$0xff]
    %v121 = vld [vmem:[#allocation8 + $0xd0] sm:$0xff]
    %v122 = vld [vmem:[#allocation8 + $0xd8] sm:$0xff]
    %v123 = vld [vmem:[#allocation8 + $0xe0] sm:$0xff]
    %v124 = vld [vmem:[#allocation8 + $0xe8] sm:$0xff]
    %v125 = vld [vmem:[#allocation8 + $0xf0] sm:$0xff]
    %v126 = vld [vmem:[#allocation8 + $0xf8] sm:$0xff]
    %v127 = vld [vmem:[#allocation11] sm:$0xf]
    %v129 = vlaneseq
    %v130 = vshrl.u32 %v129, 7
    %v131 = vsub.s32 0, %v130
    %v132 = vrot.slane %v127, %v131
    %v133 = vlaneseq
    %v134 = vshrl.u32 %v133, 7
    %v135 = vsub.s32 1, %v134
    %v136 = vrot.slane %v127, %v135
    %v137 = vlaneseq
    %v138 = vshrl.u32 %v137, 7
    %v139 = vsub.s32 2, %v138
    %v140 = vrot.slane %v127, %v139
    %v141 = vlaneseq
    %v142 = vshrl.u32 %v141, 7
    %v143 = vsub.s32 3, %v142
    %v144 = vrot.slane %v127, %v143
    %v165 = vunpack.c.l.b16 %v79
    %v166 = vunpack.c.l.b16 %v80
    %v167 = vunpack.c.l.b16 %v81
    %v168 = vunpack.c.l.b16 %v82
    %v169 = vunpack.c.l.b16 %v83
    %v170 = vunpack.c.l.b16 %v84
    %v171 = vunpack.c.l.b16 %v85
    %v172 = vunpack.c.l.b16 %v86
    %v173 = vunpack.c.l.b16 %v87
    %v174 = vunpack.c.l.b16 %v88
    %v175 = vunpack.c.l.b16 %v89
    %v176 = vunpack.c.l.b16 %v90
    %v177 = vunpack.c.l.b16 %v91
    %v178 = vunpack.c.l.b16 %v92
    %v179 = vunpack.c.l.b16 %v93
    %v180 = vunpack.c.l.b16 %v94
    %v181 = vpack.c.b16 %v166, %v165
    %v182 = vpack.c.b16 %v168, %v167
    %v183 = vpack.c.b16 %v170, %v169
    %v184 = vpack.c.b16 %v172, %v171
    %v185 = vpack.c.b16 %v174, %v173
    %v186 = vpack.c.b16 %v176, %v175
    %v187 = vpack.c.b16 %v178, %v177
    %v188 = vpack.c.b16 %v180, %v179
    %v229 = vunpack.c.l.b16 %v95
    %v230 = vunpack.c.h.b16 %v95
    %v231 = vunpack.c.l.b16 %v96
    %v232 = vunpack.c.h.b16 %v96
    %v233 = vunpack.c.l.b16 %v97
    %v234 = vunpack.c.h.b16 %v97
    %v235 = vunpack.c.l.b16 %v98
    %v236 = vunpack.c.h.b16 %v98
    %v237 = vunpack.c.l.b16 %v99
    %v238 = vunpack.c.h.b16 %v99
    %v239 = vunpack.c.l.b16 %v100
    %v240 = vunpack.c.h.b16 %v100
    %v241 = vunpack.c.l.b16 %v101
    %v242 = vunpack.c.h.b16 %v101
    %v243 = vunpack.c.l.b16 %v102
    %v244 = vunpack.c.h.b16 %v102
    %v245 = vunpack.c.l.b16 %v103
    %v246 = vunpack.c.h.b16 %v103
    %v247 = vunpack.c.l.b16 %v104
    %v248 = vunpack.c.h.b16 %v104
    %v249 = vunpack.c.l.b16 %v105
    %v250 = vunpack.c.h.b16 %v105
    %v251 = vunpack.c.l.b16 %v106
    %v252 = vunpack.c.h.b16 %v106
    %v253 = vunpack.c.l.b16 %v107
    %v254 = vunpack.c.h.b16 %v107
    %v255 = vunpack.c.l.b16 %v108
    %v256 = vunpack.c.h.b16 %v108
    %v257 = vunpack.c.l.b16 %v109
    %v258 = vunpack.c.h.b16 %v109
    %v259 = vunpack.c.l.b16 %v110
    %v260 = vunpack.c.h.b16 %v110
    %v261 = vunpack.c.l.b16 %v111
    %v262 = vunpack.c.h.b16 %v111
    %v263 = vunpack.c.l.b16 %v112
    %v264 = vunpack.c.h.b16 %v112
    %v265 = vunpack.c.l.b16 %v113
    %v266 = vunpack.c.h.b16 %v113
    %v267 = vunpack.c.l.b16 %v114
    %v268 = vunpack.c.h.b16 %v114
    %v269 = vunpack.c.l.b16 %v115
    %v270 = vunpack.c.h.b16 %v115
    %v271 = vunpack.c.l.b16 %v116
    %v272 = vunpack.c.h.b16 %v116
    %v273 = vunpack.c.l.b16 %v117
    %v274 = vunpack.c.h.b16 %v117
    %v275 = vunpack.c.l.b16 %v118
    %v276 = vunpack.c.h.b16 %v118
    %v277 = vunpack.c.l.b16 %v119
    %v278 = vunpack.c.h.b16 %v119
    %v279 = vunpack.c.l.b16 %v120
    %v280 = vunpack.c.h.b16 %v120
    %v281 = vunpack.c.l.b16 %v121
    %v282 = vunpack.c.h.b16 %v121
    %v283 = vunpack.c.l.b16 %v122
    %v284 = vunpack.c.h.b16 %v122
    %v285 = vunpack.c.l.b16 %v123
    %v286 = vunpack.c.h.b16 %v123
    %v287 = vunpack.c.l.b16 %v124
    %v288 = vunpack.c.h.b16 %v124
    %v289 = vunpack.c.l.b16 %v125
    %v290 = vunpack.c.h.b16 %v125
    %v291 = vunpack.c.l.b16 %v126
    %v292 = vunpack.c.h.b16 %v126
    %v293 = vpack.c.b16 %v233, %v229
    %v294 = vpack.c.b16 %v234, %v230
    %v295 = vpack.c.b16 %v235, %v231
    %v296 = vpack.c.b16 %v236, %v232
    %v297 = vpack.c.b16 %v241, %v237
    %v298 = vpack.c.b16 %v242, %v238
    %v299 = vpack.c.b16 %v243, %v239
    %v300 = vpack.c.b16 %v244, %v240
    %v301 = vpack.c.b16 %v249, %v245
    %v302 = vpack.c.b16 %v250, %v246
    %v303 = vpack.c.b16 %v251, %v247
    %v304 = vpack.c.b16 %v252, %v248
    %v305 = vpack.c.b16 %v257, %v253
    %v306 = vpack.c.b16 %v258, %v254
    %v307 = vpack.c.b16 %v259, %v255
    %v308 = vpack.c.b16 %v260, %v256
    %v309 = vpack.c.b16 %v265, %v261
    %v310 = vpack.c.b16 %v266, %v262
    %v311 = vpack.c.b16 %v267, %v263
    %v312 = vpack.c.b16 %v268, %v264
    %v313 = vpack.c.b16 %v273, %v269
    %v314 = vpack.c.b16 %v274, %v270
    %v315 = vpack.c.b16 %v275, %v271
    %v316 = vpack.c.b16 %v276, %v272
    %v317 = vpack.c.b16 %v281, %v277
    %v318 = vpack.c.b16 %v282, %v278
    %v319 = vpack.c.b16 %v283, %v279
    %v320 = vpack.c.b16 %v284, %v280
    %v321 = vpack.c.b16 %v289, %v285
    %v322 = vpack.c.b16 %v290, %v286
    %v323 = vpack.c.b16 %v291, %v287
    %v324 = vpack.c.b16 %v292, %v288
    %357 = vmatprep.subr.bf16.mxu0 %v294
    %358 = vmatpush1.bf16.msra.mxu0 %v293
    %359 = vmatprep.subr.bf16.mxu0 %v298
    %360 = vmatpush1.bf16.msra.mxu0 %v297
    %361 = vmatprep.subr.bf16.mxu0 %v302
    %362 = vmatpush1.bf16.msra.mxu0 %v301
    %363 = vmatprep.subr.bf16.mxu0 %v306
    %364 = vmatpush1.bf16.msra.mxu0 %v305
    %365 = vmatprep.subr.bf16.mxu0 %v310
    %366 = vmatpush1.bf16.msra.mxu0 %v309
    %367 = vmatprep.subr.bf16.mxu0 %v314
    %368 = vmatpush1.bf16.msra.mxu0 %v313
    %369 = vmatprep.subr.bf16.mxu0 %v318
    %370 = vmatpush1.bf16.msra.mxu0 %v317
    %371 = vmatprep.subr.bf16.mxu0 %v322
    %372 = vmatpush1.bf16.msra.mxu0 %v321
    %373 = vmatprep.subr.bf16.mxu0 0
    %374 = vmatpush1.bf16.msra.mxu0 0
    %375 = vmatprep.subr.bf16.mxu0 0
    %376 = vmatpush1.bf16.msra.mxu0 0
    %377 = vmatprep.subr.bf16.mxu0 0
    %378 = vmatpush1.bf16.msra.mxu0 0
    %379 = vmatprep.subr.bf16.mxu0 0
    %380 = vmatpush1.bf16.msra.mxu0 0
    %381 = vmatprep.subr.bf16.mxu0 0
    %382 = vmatpush1.bf16.msra.mxu0 0
    %383 = vmatprep.subr.bf16.mxu0 0
    %384 = vmatpush1.bf16.msra.mxu0 0
    %385 = vmatprep.subr.bf16.mxu0 0
    %386 = vmatpush1.bf16.msra.mxu0 0
    %387 = vmatprep.subr.bf16.mxu0 0
    %388 = vmatpush1.bf16.msra.mxu0 0
    %389 = vmatprep.mubr.bf16.mxu0 0
    %390 = vmatmul.mubr.bf16.gmra.mrb[0].mxu0 %v181
    %v391 = vpop.f32.mrb[0].mxu0
    %v392 = vadd.f32 %v132, %v391
    %v393 = vpop.f32.mrb[0].mxu0
    %v394 = vadd.f32 %v136, %v393
    %v395 = vpop.f32.mrb[0].mxu0
    %v396 = vadd.f32 %v132, %v395
    %v397 = vpop.f32.mrb[0].mxu0
    %v398 = vadd.f32 %v136, %v397
    %399 = vmatprep.mubr.bf16.mxu0 0
    %400 = vmatmul.mubr.bf16.gmra.mrb[0].mxu0 %v182
    %v401 = vpop.f32.mrb[0].mxu0
    %v402 = vadd.f32 %v132, %v401
    %v403 = vpop.f32.mrb[0].mxu0
    %v404 = vadd.f32 %v136, %v403
    %v405 = vpop.f32.mrb[0].mxu0
    %v406 = vadd.f32 %v132, %v405
    %v407 = vpop.f32.mrb[0].mxu0
    %v408 = vadd.f32 %v136, %v407
    %409 = vmatprep.mubr.bf16.mxu0 0
    %410 = vmatmul.mubr.bf16.gmra.mrb[0].mxu0 %v183
    %v411 = vpop.f32.mrb[0].mxu0
    %v412 = vadd.f32 %v132, %v411
    %v413 = vpop.f32.mrb[0].mxu0
    %v414 = vadd.f32 %v136, %v413
    %v415 = vpop.f32.mrb[0].mxu0
    %v416 = vadd.f32 %v132, %v415
    %v417 = vpop.f32.mrb[0].mxu0
    %v418 = vadd.f32 %v136, %v417
    %419 = vmatprep.mubr.bf16.mxu0 0
    %420 = vmatmul.mubr.bf16.gmra.mrb[0].mxu0 %v184
    %v421 = vpop.f32.mrb[0].mxu0
    %v422 = vadd.f32 %v132, %v421
    %v423 = vpop.f32.mrb[0].mxu0
    %v424 = vadd.f32 %v136, %v423
    %v425 = vpop.f32.mrb[0].mxu0
    %v426 = vadd.f32 %v132, %v425
    %v427 = vpop.f32.mrb[0].mxu0
    %v428 = vadd.f32 %v136, %v427
    %429 = vmatprep.mubr.bf16.mxu0 0
    %430 = vmatmul.mubr.bf16.gmra.mrb[0].mxu0 %v185
    %v431 = vpop.f32.mrb[0].mxu0
    %v432 = vadd.f32 %v132, %v431
    %v433 = vpop.f32.mrb[0].mxu0
    %v434 = vadd.f32 %v136, %v433
    %v435 = vpop.f32.mrb[0].mxu0
    %v436 = vadd.f32 %v132, %v435
    %v437 = vpop.f32.mrb[0].mxu0
    %v438 = vadd.f32 %v136, %v437
    %439 = vmatprep.mubr.bf16.mxu0 0
    %440 = vmatmul.mubr.bf16.gmra.mrb[0].mxu0 %v186
    %v441 = vpop.f32.mrb[0].mxu0
    %v442 = vadd.f32 %v132, %v441
    %v443 = vpop.f32.mrb[0].mxu0
    %v444 = vadd.f32 %v136, %v443
    %v445 = vpop.f32.mrb[0].mxu0
    %v446 = vadd.f32 %v132, %v445
    %v447 = vpop.f32.mrb[0].mxu0
    %v448 = vadd.f32 %v136, %v447
    %449 = vmatprep.mubr.bf16.mxu0 0
    %450 = vmatmul.mubr.bf16.gmra.mrb[0].mxu0 %v187
    %v451 = vpop.f32.mrb[0].mxu0
    %v452 = vadd.f32 %v132, %v451
    %v453 = vpop.f32.mrb[0].mxu0
    %v454 = vadd.f32 %v136, %v453
    %v455 = vpop.f32.mrb[0].mxu0
    %v456 = vadd.f32 %v132, %v455
    %v457 = vpop.f32.mrb[0].mxu0
    %v458 = vadd.f32 %v136, %v457
    %459 = vmatprep.mubr.bf16.mxu0 0
    %460 = vmatmul.mubr.bf16.gmra.mrb[0].mxu0 %v188
    %v461 = vpop.f32.mrb[0].mxu0
    %v462 = vadd.f32 %v132, %v461
    %v463 = vpop.f32.mrb[0].mxu0
    %v464 = vadd.f32 %v136, %v463
    %v465 = vpop.f32.mrb[0].mxu0
    %v466 = vadd.f32 %v132, %v465
    %v467 = vpop.f32.mrb[0].mxu0
    %v468 = vadd.f32 %v136, %v467
    %469 = vdwg.mxu0
    %470 = vmatprep.subr.bf16.mxu0 %v296
    %471 = vmatpush1.bf16.msra.mxu0 %v295
    %472 = vmatprep.subr.bf16.mxu0 %v300
    %473 = vmatpush1.bf16.msra.mxu0 %v299
    %474 = vmatprep.subr.bf16.mxu0 %v304
    %475 = vmatpush1.bf16.msra.mxu0 %v303
    %476 = vmatprep.subr.bf16.mxu0 %v308
    %477 = vmatpush1.bf16.msra.mxu0 %v307
    %478 = vmatprep.subr.bf16.mxu0 %v312
    %479 = vmatpush1.bf16.msra.mxu0 %v311
    %480 = vmatprep.subr.bf16.mxu0 %v316
    %481 = vmatpush1.bf16.msra.mxu0 %v315
    %482 = vmatprep.subr.bf16.mxu0 %v320
    %483 = vmatpush1.bf16.msra.mxu0 %v319
    %484 = vmatprep.subr.bf16.mxu0 %v324
    %485 = vmatpush1.bf16.msra.mxu0 %v323
    %486 = vmatprep.subr.bf16.mxu0 0
    %487 = vmatpush1.bf16.msra.mxu0 0
    %488 = vmatprep.subr.bf16.mxu0 0
    %489 = vmatpush1.bf16.msra.mxu0 0
    %490 = vmatprep.subr.bf16.mxu0 0
    %491 = vmatpush1.bf16.msra.mxu0 0
    %492 = vmatprep.subr.bf16.mxu0 0
    %493 = vmatpush1.bf16.msra.mxu0 0
    %494 = vmatprep.subr.bf16.mxu0 0
    %495 = vmatpush1.bf16.msra.mxu0 0
    %496 = vmatprep.subr.bf16.mxu0 0
    %497 = vmatpush1.bf16.msra.mxu0 0
    %498 = vmatprep.subr.bf16.mxu0 0
    %499 = vmatpush1.bf16.msra.mxu0 0
    %500 = vmatprep.subr.bf16.mxu0 0
    %501 = vmatpush1.bf16.msra.mxu0 0
    %502 = vmatprep.mubr.bf16.mxu0 0
    %503 = vmatmul.mubr.bf16.gmra.mrb[0].mxu0 %v181
    %v504 = vpop.f32.mrb[0].mxu0
    %v505 = vadd.f32 %v140, %v504
    %v506 = vpop.f32.mrb[0].mxu0
    %v507 = vadd.f32 %v144, %v506
    %v508 = vpop.f32.mrb[0].mxu0
    %v509 = vadd.f32 %v140, %v508
    %v510 = vpop.f32.mrb[0].mxu0
    %v511 = vadd.f32 %v144, %v510
    %512 = vmatprep.mubr.bf16.mxu0 0
    %513 = vmatmul.mubr.bf16.gmra.mrb[0].mxu0 %v182
    %v514 = vpop.f32.mrb[0].mxu0
    %v515 = vadd.f32 %v140, %v514
    %v516 = vpop.f32.mrb[0].mxu0
    %v517 = vadd.f32 %v144, %v516
    %v518 = vpop.f32.mrb[0].mxu0
    %v519 = vadd.f32 %v140, %v518
    %v520 = vpop.f32.mrb[0].mxu0
    %v521 = vadd.f32 %v144, %v520
    %522 = vmatprep.mubr.bf16.mxu0 0
    %523 = vmatmul.mubr.bf16.gmra.mrb[0].mxu0 %v183
    %v524 = vpop.f32.mrb[0].mxu0
    %v525 = vadd.f32 %v140, %v524
    %v526 = vpop.f32.mrb[0].mxu0
    %v527 = vadd.f32 %v144, %v526
    %v528 = vpop.f32.mrb[0].mxu0
    %v529 = vadd.f32 %v140, %v528
    %v530 = vpop.f32.mrb[0].mxu0
    %v531 = vadd.f32 %v144, %v530
    %532 = vmatprep.mubr.bf16.mxu0 0
    %533 = vmatmul.mubr.bf16.gmra.mrb[0].mxu0 %v184
    %v534 = vpop.f32.mrb[0].mxu0
    %v535 = vadd.f32 %v140, %v534
    %v536 = vpop.f32.mrb[0].mxu0
    %v537 = vadd.f32 %v144, %v536
    %v538 = vpop.f32.mrb[0].mxu0
    %v539 = vadd.f32 %v140, %v538
    %v540 = vpop.f32.mrb[0].mxu0
    %v541 = vadd.f32 %v144, %v540
    %542 = vmatprep.mubr.bf16.mxu0 0
    %543 = vmatmul.mubr.bf16.gmra.mrb[0].mxu0 %v185
    %v544 = vpop.f32.mrb[0].mxu0
    %v545 = vadd.f32 %v140, %v544
    %v546 = vpop.f32.mrb[0].mxu0
    %v547 = vadd.f32 %v144, %v546
    %v548 = vpop.f32.mrb[0].mxu0
    %v549 = vadd.f32 %v140, %v548
    %v550 = vpop.f32.mrb[0].mxu0
    %v551 = vadd.f32 %v144, %v550
    %552 = vmatprep.mubr.bf16.mxu0 0
    %553 = vmatmul.mubr.bf16.gmra.mrb[0].mxu0 %v186
    %v554 = vpop.f32.mrb[0].mxu0
    %v555 = vadd.f32 %v140, %v554
    %v556 = vpop.f32.mrb[0].mxu0
    %v557 = vadd.f32 %v144, %v556
    %v558 = vpop.f32.mrb[0].mxu0
    %v559 = vadd.f32 %v140, %v558
    %v560 = vpop.f32.mrb[0].mxu0
    %v561 = vadd.f32 %v144, %v560
    %562 = vmatprep.mubr.bf16.mxu0 0
    %563 = vmatmul.mubr.bf16.gmra.mrb[0].mxu0 %v187
    %v564 = vpop.f32.mrb[0].mxu0
    %v565 = vadd.f32 %v140, %v564
    %v566 = vpop.f32.mrb[0].mxu0
    %v567 = vadd.f32 %v144, %v566
    %v568 = vpop.f32.mrb[0].mxu0
    %v569 = vadd.f32 %v140, %v568
    %v570 = vpop.f32.mrb[0].mxu0
    %v571 = vadd.f32 %v144, %v570
    %572 = vmatprep.mubr.bf16.mxu0 0
    %573 = vmatmul.mubr.bf16.gmra.mrb[0].mxu0 %v188
    %v574 = vpop.f32.mrb[0].mxu0
    %v575 = vadd.f32 %v140, %v574
    %v576 = vpop.f32.mrb[0].mxu0
    %v577 = vadd.f32 %v144, %v576
    %v578 = vpop.f32.mrb[0].mxu0
    %v579 = vadd.f32 %v140, %v578
    %v580 = vpop.f32.mrb[0].mxu0
    %v581 = vadd.f32 %v144, %v580
    %582 = vdwg.mxu0
    %v583 = vpack.c.bf16 %v396, %v392
    %v584 = vpack.c.bf16 %v398, %v394
    %v585 = vpack.c.bf16 %v509, %v505
    %v586 = vpack.c.bf16 %v511, %v507
    %v587 = vpack.c.bf16 %v406, %v402
    %v588 = vpack.c.bf16 %v408, %v404
    %v589 = vpack.c.bf16 %v519, %v515
    %v590 = vpack.c.bf16 %v521, %v517
    %v591 = vpack.c.bf16 %v416, %v412
    %v592 = vpack.c.bf16 %v418, %v414
    %v593 = vpack.c.bf16 %v529, %v525
    %v594 = vpack.c.bf16 %v531, %v527
    %v595 = vpack.c.bf16 %v426, %v422
    %v596 = vpack.c.bf16 %v428, %v424
    %v597 = vpack.c.bf16 %v539, %v535
    %v598 = vpack.c.bf16 %v541, %v537
    %v599 = vpack.c.bf16 %v436, %v432
    %v600 = vpack.c.bf16 %v438, %v434
    %v601 = vpack.c.bf16 %v549, %v545
    %v602 = vpack.c.bf16 %v551, %v547
    %v603 = vpack.c.bf16 %v446, %v442
    %v604 = vpack.c.bf16 %v448, %v444
    %v605 = vpack.c.bf16 %v559, %v555
    %v606 = vpack.c.bf16 %v561, %v557
    %v607 = vpack.c.bf16 %v456, %v452
    %v608 = vpack.c.bf16 %v458, %v454
    %v609 = vpack.c.bf16 %v569, %v565
    %v610 = vpack.c.bf16 %v571, %v567
    %v611 = vpack.c.bf16 %v466, %v462
    %v612 = vpack.c.bf16 %v468, %v464
    %v613 = vpack.c.bf16 %v579, %v575
    %v614 = vpack.c.bf16 %v581, %v577
    %615 = vst [vmem:[#allocation4] sm:$0xff] %v583
    %616 = vst [vmem:[#allocation4 + $0x8] sm:$0xff] %v584
    %617 = vst [vmem:[#allocation4 + $0x10] sm:$0xff] %v585
    %618 = vst [vmem:[#allocation4 + $0x18] sm:$0xff] %v586
    %619 = vst [vmem:[#allocation4 + $0x20] sm:$0xff] %v587
    %620 = vst [vmem:[#allocation4 + $0x28] sm:$0xff] %v588
    %621 = vst [vmem:[#allocation4 + $0x30] sm:$0xff] %v589
    %622 = vst [vmem:[#allocation4 + $0x38] sm:$0xff] %v590
    %623 = vst [vmem:[#allocation4 + $0x40] sm:$0xff] %v591
    %624 = vst [vmem:[#allocation4 + $0x48] sm:$0xff] %v592
    %625 = vst [vmem:[#allocation4 + $0x50] sm:$0xff] %v593
    %626 = vst [vmem:[#allocation4 + $0x58] sm:$0xff] %v594
    %627 = vst [vmem:[#allocation4 + $0x60] sm:$0xff] %v595
    %628 = vst [vmem:[#allocation4 + $0x68] sm:$0xff] %v596
    %629 = vst [vmem:[#allocation4 + $0x70] sm:$0xff] %v597
    %630 = vst [vmem:[#allocation4 + $0x78] sm:$0xff] %v598
    %631 = vst [vmem:[#allocation4 + $0x80] sm:$0xff] %v599
    %632 = vst [vmem:[#allocation4 + $0x88] sm:$0xff] %v600
    %633 = vst [vmem:[#allocation4 + $0x90] sm:$0xff] %v601
    %634 = vst [vmem:[#allocation4 + $0x98] sm:$0xff] %v602
    %635 = vst [vmem:[#allocation4 + $0xa0] sm:$0xff] %v603
    %636 = vst [vmem:[#allocation4 + $0xa8] sm:$0xff] %v604
    %637 = vst [vmem:[#allocation4 + $0xb0] sm:$0xff] %v605
    %638 = vst [vmem:[#allocation4 + $0xb8] sm:$0xff] %v606
    %639 = vst [vmem:[#allocation4 + $0xc0] sm:$0xff] %v607
    %640 = vst [vmem:[#allocation4 + $0xc8] sm:$0xff] %v608
    %641 = vst [vmem:[#allocation4 + $0xd0] sm:$0xff] %v609
    %642 = vst [vmem:[#allocation4 + $0xd8] sm:$0xff] %v610
    %643 = vst [vmem:[#allocation4 + $0xe0] sm:$0xff] %v611
    %644 = vst [vmem:[#allocation4 + $0xe8] sm:$0xff] %v612
    %645 = vst [vmem:[#allocation4 + $0xf0] sm:$0xff] %v613
    %646 = vst [vmem:[#allocation4 + $0xf8] sm:$0xff] %v614
    %v647 = vld [vmem:[#allocation10] sm:$0xff]
    %v648 = vld [vmem:[#allocation10 + $0x8] sm:$0xff]
    %v649 = vld [vmem:[#allocation10 + $0x10] sm:$0xff]
    %v650 = vld [vmem:[#allocation10 + $0x18] sm:$0xff]
    %v651 = vld [vmem:[#allocation10 + $0x20] sm:$0xff]
    %v652 = vld [vmem:[#allocation10 + $0x28] sm:$0xff]
    %v653 = vld [vmem:[#allocation10 + $0x30] sm:$0xff]
    %v654 = vld [vmem:[#allocation10 + $0x38] sm:$0xff]
    %v655 = vld [vmem:[#allocation10 + $0x40] sm:$0xff]
    %v656 = vld [vmem:[#allocation10 + $0x48] sm:$0xff]
    %v657 = vld [vmem:[#allocation10 + $0x50] sm:$0xff]
    %v658 = vld [vmem:[#allocation10 + $0x58] sm:$0xff]
    %v659 = vld [vmem:[#allocation10 + $0x60] sm:$0xff]
    %v660 = vld [vmem:[#allocation10 + $0x68] sm:$0xff]
    %v661 = vld [vmem:[#allocation10 + $0x70] sm:$0xff]
    %v662 = vld [vmem:[#allocation10 + $0x78] sm:$0xff]
    %v663 = vld [vmem:[#allocation10 + $0x80] sm:$0xff]
    %v664 = vld [vmem:[#allocation10 + $0x88] sm:$0xff]
    %v665 = vld [vmem:[#allocation10 + $0x90] sm:$0xff]
    %v666 = vld [vmem:[#allocation10 + $0x98] sm:$0xff]
    %v667 = vld [vmem:[#allocation10 + $0xa0] sm:$0xff]
    %v668 = vld [vmem:[#allocation10 + $0xa8] sm:$0xff]
    %v669 = vld [vmem:[#allocation10 + $0xb0] sm:$0xff]
    %v670 = vld [vmem:[#allocation10 + $0xb8] sm:$0xff]
    %v671 = vld [vmem:[#allocation10 + $0xc0] sm:$0xff]
    %v672 = vld [vmem:[#allocation10 + $0xc8] sm:$0xff]
    %v673 = vld [vmem:[#allocation10 + $0xd0] sm:$0xff]
    %v674 = vld [vmem:[#allocation10 + $0xd8] sm:$0xff]
    %v675 = vld [vmem:[#allocation10 + $0xe0] sm:$0xff]
    %v676 = vld [vmem:[#allocation10 + $0xe8] sm:$0xff]
    %v677 = vld [vmem:[#allocation10 + $0xf0] sm:$0xff]
    %v678 = vld [vmem:[#allocation10 + $0xf8] sm:$0xff]
    %v679 = vld [vmem:[#allocation2] sm:$0xff]
    %v680 = vld [vmem:[#allocation3] sm:$0xff]
    %v681 = vld [vmem:[#allocation3 + $0x8] sm:$0xff]
    %v682 = vld [vmem:[#allocation4] sm:$0xff]
    %v683 = vld [vmem:[#allocation4 + $0x8] sm:$0xff]
    %v684 = vld [vmem:[#allocation4 + $0x10] sm:$0xff]
    %v685 = vld [vmem:[#allocation4 + $0x18] sm:$0xff]
    %v718 = vunpack.c.l.b16 %v647
    %v719 = vunpack.c.h.b16 %v647
    %v720 = vunpack.c.l.b16 %v648
    %v721 = vunpack.c.h.b16 %v648
    %v722 = vunpack.c.l.b16 %v649
    %v723 = vunpack.c.h.b16 %v649
    %v724 = vunpack.c.l.b16 %v650
    %v725 = vunpack.c.h.b16 %v650
    %v726 = vunpack.c.l.b16 %v651
    %v727 = vunpack.c.h.b16 %v651
    %v728 = vunpack.c.l.b16 %v652
    %v729 = vunpack.c.h.b16 %v652
    %v730 = vunpack.c.l.b16 %v653
    %v731 = vunpack.c.h.b16 %v653
    %v732 = vunpack.c.l.b16 %v654
    %v733 = vunpack.c.h.b16 %v654
    %v734 = vunpack.c.l.b16 %v655
    %v735 = vunpack.c.h.b16 %v655
    %v736 = vunpack.c.l.b16 %v656
    %v737 = vunpack.c.h.b16 %v656
    %v738 = vunpack.c.l.b16 %v657
    %v739 = vunpack.c.h.b16 %v657
    %v740 = vunpack.c.l.b16 %v658
    %v741 = vunpack.c.h.b16 %v658
    %v742 = vunpack.c.l.b16 %v659
    %v743 = vunpack.c.h.b16 %v659
    %v744 = vunpack.c.l.b16 %v660
    %v745 = vunpack.c.h.b16 %v660
    %v746 = vunpack.c.l.b16 %v661
    %v747 = vunpack.c.h.b16 %v661
    %v748 = vunpack.c.l.b16 %v662
    %v749 = vunpack.c.h.b16 %v662
    %v750 = vunpack.c.l.b16 %v663
    %v751 = vunpack.c.h.b16 %v663
    %v752 = vunpack.c.l.b16 %v664
    %v753 = vunpack.c.h.b16 %v664
    %v754 = vunpack.c.l.b16 %v665
    %v755 = vunpack.c.h.b16 %v665
    %v756 = vunpack.c.l.b16 %v666
    %v757 = vunpack.c.h.b16 %v666
    %v758 = vunpack.c.l.b16 %v667
    %v759 = vunpack.c.h.b16 %v667
    %v760 = vunpack.c.l.b16 %v668
    %v761 = vunpack.c.h.b16 %v668
    %v762 = vunpack.c.l.b16 %v669
    %v763 = vunpack.c.h.b16 %v669
    %v764 = vunpack.c.l.b16 %v670
    %v765 = vunpack.c.h.b16 %v670
    %v766 = vunpack.c.l.b16 %v671
    %v767 = vunpack.c.h.b16 %v671
    %v768 = vunpack.c.l.b16 %v672
    %v769 = vunpack.c.h.b16 %v672
    %v770 = vunpack.c.l.b16 %v673
    %v771 = vunpack.c.h.b16 %v673
    %v772 = vunpack.c.l.b16 %v674
    %v773 = vunpack.c.h.b16 %v674
    %v774 = vunpack.c.l.b16 %v675
    %v775 = vunpack.c.h.b16 %v675
    %v776 = vunpack.c.l.b16 %v676
    %v777 = vunpack.c.h.b16 %v676
    %v778 = vunpack.c.l.b16 %v677
    %v779 = vunpack.c.h.b16 %v677
    %v780 = vunpack.c.l.b16 %v678
    %v781 = vunpack.c.h.b16 %v678
    %v782 = vpack.c.b16 %v722, %v718
    %v783 = vpack.c.b16 %v723, %v719
    %v784 = vpack.c.b16 %v724, %v720
    %v785 = vpack.c.b16 %v725, %v721
    %v786 = vpack.c.b16 %v730, %v726
    %v787 = vpack.c.b16 %v731, %v727
    %v788 = vpack.c.b16 %v732, %v728
    %v789 = vpack.c.b16 %v733, %v729
    %v790 = vpack.c.b16 %v738, %v734
    %v791 = vpack.c.b16 %v739, %v735
    %v792 = vpack.c.b16 %v740, %v736
    %v793 = vpack.c.b16 %v741, %v737
    %v794 = vpack.c.b16 %v746, %v742
    %v795 = vpack.c.b16 %v747, %v743
    %v796 = vpack.c.b16 %v748, %v744
    %v797 = vpack.c.b16 %v749, %v745
    %v798 = vpack.c.b16 %v754, %v750
    %v799 = vpack.c.b16 %v755, %v751
    %v800 = vpack.c.b16 %v756, %v752
    %v801 = vpack.c.b16 %v757, %v753
    %v802 = vpack.c.b16 %v762, %v758
    %v803 = vpack.c.b16 %v763, %v759
    %v804 = vpack.c.b16 %v764, %v760
    %v805 = vpack.c.b16 %v765, %v761
    %v806 = vpack.c.b16 %v770, %v766
    %v807 = vpack.c.b16 %v771, %v767
    %v808 = vpack.c.b16 %v772, %v768
    %v809 = vpack.c.b16 %v773, %v769
    %v810 = vpack.c.b16 %v778, %v774
    %v811 = vpack.c.b16 %v779, %v775
    %v812 = vpack.c.b16 %v780, %v776
    %v813 = vpack.c.b16 %v781, %v777
    %846 = vmatprep.subr.bf16.mxu0 %v783
    %847 = vmatpush1.bf16.msra.mxu0 %v782
    %848 = vmatprep.subr.bf16.mxu0 %v787
    %849 = vmatpush1.bf16.msra.mxu0 %v786
    %850 = vmatprep.subr.bf16.mxu0 %v791
    %851 = vmatpush1.bf16.msra.mxu0 %v790
    %852 = vmatprep.subr.bf16.mxu0 %v795
    %853 = vmatpush1.bf16.msra.mxu0 %v794
    %854 = vmatprep.subr.bf16.mxu0 %v799
    %855 = vmatpush1.bf16.msra.mxu0 %v798
    %856 = vmatprep.subr.bf16.mxu0 %v803
    %857 = vmatpush1.bf16.msra.mxu0 %v802
    %858 = vmatprep.subr.bf16.mxu0 %v807
    %859 = vmatpush1.bf16.msra.mxu0 %v806
    %860 = vmatprep.subr.bf16.mxu0 %v811
    %861 = vmatpush1.bf16.msra.mxu0 %v810
    %862 = vmatprep.subr.bf16.mxu0 0
    %863 = vmatpush1.bf16.msra.mxu0 0
    %864 = vmatprep.subr.bf16.mxu0 0
    %865 = vmatpush1.bf16.msra.mxu0 0
    %866 = vmatprep.subr.bf16.mxu0 0
    %867 = vmatpush1.bf16.msra.mxu0 0
    %868 = vmatprep.subr.bf16.mxu0 0
    %869 = vmatpush1.bf16.msra.mxu0 0
    %870 = vmatprep.subr.bf16.mxu0 0
    %871 = vmatpush1.bf16.msra.mxu0 0
    %872 = vmatprep.subr.bf16.mxu0 0
    %873 = vmatpush1.bf16.msra.mxu0 0
    %874 = vmatprep.subr.bf16.mxu0 0
    %875 = vmatpush1.bf16.msra.mxu0 0
    %876 = vmatprep.subr.bf16.mxu0 0
    %877 = vmatpush1.bf16.msra.mxu0 0
    %878 = vmatprep.mubr.bf16.mxu0 0
    %879 = vmatmul.mubr.bf16.gmra.mrb[0].mxu0 %v679
    %v880 = vpop.f32.mrb[0].mxu0
    %v881 = vadd.f32 0.0, %v880
    %v882 = vpop.f32.mrb[0].mxu0
    %v883 = vadd.f32 0.0, %v882
    %v884 = vpop.f32.mrb[0].mxu0
    %v885 = vadd.f32 0.0, %v884
    %v886 = vpop.f32.mrb[0].mxu0
    %v887 = vadd.f32 0.0, %v886
    %888 = vdwg.mxu0
    %889 = vmatprep.subr.bf16.mxu0 %v785
    %890 = vmatpush1.bf16.msra.mxu0 %v784
    %891 = vmatprep.subr.bf16.mxu0 %v789
    %892 = vmatpush1.bf16.msra.mxu0 %v788
    %893 = vmatprep.subr.bf16.mxu0 %v793
    %894 = vmatpush1.bf16.msra.mxu0 %v792
    %895 = vmatprep.subr.bf16.mxu0 %v797
    %896 = vmatpush1.bf16.msra.mxu0 %v796
    %897 = vmatprep.subr.bf16.mxu0 %v801
    %898 = vmatpush1.bf16.msra.mxu0 %v800
    %899 = vmatprep.subr.bf16.mxu0 %v805
    %900 = vmatpush1.bf16.msra.mxu0 %v804
    %901 = vmatprep.subr.bf16.mxu0 %v809
    %902 = vmatpush1.bf16.msra.mxu0 %v808
    %903 = vmatprep.subr.bf16.mxu0 %v813
    %904 = vmatpush1.bf16.msra.mxu0 %v812
    %905 = vmatprep.subr.bf16.mxu0 0
    %906 = vmatpush1.bf16.msra.mxu0 0
    %907 = vmatprep.subr.bf16.mxu0 0
    %908 = vmatpush1.bf16.msra.mxu0 0
    %909 = vmatprep.subr.bf16.mxu0 0
    %910 = vmatpush1.bf16.msra.mxu0 0
    %911 = vmatprep.subr.bf16.mxu0 0
    %912 = vmatpush1.bf16.msra.mxu0 0
    %913 = vmatprep.subr.bf16.mxu0 0
    %914 = vmatpush1.bf16.msra.mxu0 0
    %915 = vmatprep.subr.bf16.mxu0 0
    %916 = vmatpush1.bf16.msra.mxu0 0
    %917 = vmatprep.subr.bf16.mxu0 0
    %918 = vmatpush1.bf16.msra.mxu0 0
    %919 = vmatprep.subr.bf16.mxu0 0
    %920 = vmatpush1.bf16.msra.mxu0 0
    %921 = vmatprep.mubr.bf16.mxu0 0
    %922 = vmatmul.mubr.bf16.gmra.mrb[0].mxu0 %v679
    %v923 = vpop.f32.mrb[0].mxu0
    %v924 = vadd.f32 0.0, %v923
    %v925 = vpop.f32.mrb[0].mxu0
    %v926 = vadd.f32 0.0, %v925
    %v927 = vpop.f32.mrb[0].mxu0
    %v928 = vadd.f32 0.0, %v927
    %v929 = vpop.f32.mrb[0].mxu0
    %v930 = vadd.f32 0.0, %v929
    %931 = vdwg.mxu0
    %v932 = vunpack.c.l.bf16 %v682
    %v933 = vunpack.c.l.bf16 %v683
    %v934 = vunpack.c.l.bf16 %v684
    %v935 = vunpack.c.l.bf16 %v685
    %v936 = vunpack.c.h.bf16 %v682
    %v937 = vunpack.c.h.bf16 %v683
    %v938 = vunpack.c.h.bf16 %v684
    %v939 = vunpack.c.h.bf16 %v685
    %v940 = vadd.f32 %v932, %v881
    %v941 = vadd.f32 %v933, %v883
    %v942 = vadd.f32 %v934, %v924
    %v943 = vadd.f32 %v935, %v926
    %v944 = vadd.f32 %v936, %v885
    %v945 = vadd.f32 %v937, %v887
    %v946 = vadd.f32 %v938, %v928
    %v947 = vadd.f32 %v939, %v930
    %v948 = vxor.u32 %v940, 2147483648
    %v949 = vxor.u32 %v944, 2147483648
    %v950 = vmul.f32 %v948, 1.442695
    %v951 = vpow.pop %v950
    %v952 = vmul.f32 %v949, 1.442695
    %v953 = vpow.pop %v952
    %v954 = vadd.f32 %v951, 1.0
    %v955 = vadd.f32 %v953, 1.0
    %v956 = vrcp.pop %v954
    %v957 = vmul.f32 1.0, %v956
    %v958 = vrcp.pop %v955
    %v959 = vmul.f32 1.0, %v958
    %v960 = vxor.u32 %v941, 2147483648
    %v961 = vxor.u32 %v945, 2147483648
    %v962 = vmul.f32 %v960, 1.442695
    %v963 = vpow.pop %v962
    %v964 = vmul.f32 %v961, 1.442695
    %v965 = vpow.pop %v964
    %v966 = vadd.f32 %v963, 1.0
    %v967 = vadd.f32 %v965, 1.0
    %v968 = vrcp.pop %v966
    %v969 = vmul.f32 1.0, %v968
    %v970 = vrcp.pop %v967
    %v971 = vmul.f32 1.0, %v970
    %v972 = vtanh.pop %v942
    %v973 = vtanh.pop %v946
    %v974 = vxor.u32 %v943, 2147483648
    %v975 = vxor.u32 %v947, 2147483648
    %v976 = vmul.f32 %v974, 1.442695
    %v977 = vpow.pop %v976
    %v978 = vmul.f32 %v975, 1.442695
    %v979 = vpow.pop %v978
    %v980 = vadd.f32 %v977, 1.0
    %v981 = vadd.f32 %v979, 1.0
    %v982 = vrcp.pop %v980
    %v983 = vmul.f32 1.0, %v982
    %v984 = vrcp.pop %v981
    %v985 = vmul.f32 1.0, %v984
    %v986 = vmul.f32 %v969, %v680
    %v987 = vmul.f32 %v971, %v681
    %v988 = vmul.f32 %v957, %v972
    %v989 = vmul.f32 %v959, %v973
    %v990 = vadd.f32 %v986, %v988
    %v991 = vadd.f32 %v987, %v989
    %v992 = vtanh.pop %v990
    %v993 = vtanh.pop %v991
    %v994 = vmul.f32 %v983, %v992
    %v995 = vmul.f32 %v985, %v993
    %v996 = vpack.c.bf16 %v995, %v994
    %v998 = vunpack.c.l.b16 %v996
    %v999 = vunpack.c.h.b16 %v996
    %v1000 = vpack.c.b16 %v998, %v998
    %v1001 = vpack.c.b16 %v999, %v999
    %1004 = vst [vmem:[#allocation13] sm:$0xf] %v1000
    %1005 = vst [vmem:[#allocation13 + $0x4] sm:$0xf] %v1001
    %v1006 = vld [vmem:[#allocation4 + $0x20] sm:$0xff]
    %v1007 = vld [vmem:[#allocation4 + $0x28] sm:$0xff]
    %v1008 = vld [vmem:[#allocation4 + $0x30] sm:$0xff]
    %v1009 = vld [vmem:[#allocation4 + $0x38] sm:$0xff]
    %1010 = vmatprep.subr.bf16.mxu0 %v783
    %1011 = vmatpush1.bf16.msra.mxu0 %v782
    %1012 = vmatprep.subr.bf16.mxu0 %v787
    %1013 = vmatpush1.bf16.msra.mxu0 %v786
    %1014 = vmatprep.subr.bf16.mxu0 %v791
    %1015 = vmatpush1.bf16.msra.mxu0 %v790
    %1016 = vmatprep.subr.bf16.mxu0 %v795
    %1017 = vmatpush1.bf16.msra.mxu0 %v794
    %1018 = vmatprep.subr.bf16.mxu0 %v799
    %1019 = vmatpush1.bf16.msra.mxu0 %v798
    %1020 = vmatprep.subr.bf16.mxu0 %v803
    %1021 = vmatpush1.bf16.msra.mxu0 %v802
    %1022 = vmatprep.subr.bf16.mxu0 %v807
    %1023 = vmatpush1.bf16.msra.mxu0 %v806
    %1024 = vmatprep.subr.bf16.mxu0 %v811
    %1025 = vmatpush1.bf16.msra.mxu0 %v810
    %1026 = vmatprep.subr.bf16.mxu0 0
    %1027 = vmatpush1.bf16.msra.mxu0 0
    %1028 = vmatprep.subr.bf16.mxu0 0
    %1029 = vmatpush1.bf16.msra.mxu0 0
    %1030 = vmatprep.subr.bf16.mxu0 0
    %1031 = vmatpush1.bf16.msra.mxu0 0
    %1032 = vmatprep.subr.bf16.mxu0 0
    %1033 = vmatpush1.bf16.msra.mxu0 0
    %1034 = vmatprep.subr.bf16.mxu0 0
    %1035 = vmatpush1.bf16.msra.mxu0 0
    %1036 = vmatprep.subr.bf16.mxu0 0
    %1037 = vmatpush1.bf16.msra.mxu0 0
    %1038 = vmatprep.subr.bf16.mxu0 0
    %1039 = vmatpush1.bf16.msra.mxu0 0
    %1040 = vmatprep.subr.bf16.mxu0 0
    %1041 = vmatpush1.bf16.msra.mxu0 0
    %1042 = vmatprep.mubr.bf16.mxu0 0
    %1043 = vmatmul.mubr.bf16.gmra.mrb[0].mxu0 %v996
    %v1044 = vpop.f32.mrb[0].mxu0
    %v1045 = vadd.f32 0.0, %v1044
    %v1046 = vpop.f32.mrb[0].mxu0
    %v1047 = vadd.f32 0.0, %v1046
    %v1048 = vpop.f32.mrb[0].mxu0
    %v1049 = vadd.f32 0.0, %v1048
    %v1050 = vpop.f32.mrb[0].mxu0
    %v1051 = vadd.f32 0.0, %v1050
    %1052 = vdwg.mxu0
    %1053 = vmatprep.subr.bf16.mxu0 %v785
    %1054 = vmatpush1.bf16.msra.mxu0 %v784
    %1055 = vmatprep.subr.bf16.mxu0 %v789
    %1056 = vmatpush1.bf16.msra.mxu0 %v788
    %1057 = vmatprep.subr.bf16.mxu0 %v793
    %1058 = vmatpush1.bf16.msra.mxu0 %v792
    %1059 = vmatprep.subr.bf16.mxu0 %v797
    %1060 = vmatpush1.bf16.msra.mxu0 %v796
    %1061 = vmatprep.subr.bf16.mxu0 %v801
    %1062 = vmatpush1.bf16.msra.mxu0 %v800
    %1063 = vmatprep.subr.bf16.mxu0 %v805
    %1064 = vmatpush1.bf16.msra.mxu0 %v804
    %1065 = vmatprep.subr.bf16.mxu0 %v809
    %1066 = vmatpush1.bf16.msra.mxu0 %v808
    %1067 = vmatprep.subr.bf16.mxu0 %v813
    %1068 = vmatpush1.bf16.msra.mxu0 %v812
    %1069 = vmatprep.subr.bf16.mxu0 0
    %1070 = vmatpush1.bf16.msra.mxu0 0
    %1071 = vmatprep.subr.bf16.mxu0 0
    %1072 = vmatpush1.bf16.msra.mxu0 0
    %1073 = vmatprep.subr.bf16.mxu0 0
    %1074 = vmatpush1.bf16.msra.mxu0 0
    %1075 = vmatprep.subr.bf16.mxu0 0
    %1076 = vmatpush1.bf16.msra.mxu0 0
    %1077 = vmatprep.subr.bf16.mxu0 0
    %1078 = vmatpush1.bf16.msra.mxu0 0
    %1079 = vmatprep.subr.bf16.mxu0 0
    %1080 = vmatpush1.bf16.msra.mxu0 0
    %1081 = vmatprep.subr.bf16.mxu0 0
    %1082 = vmatpush1.bf16.msra.mxu0 0
    %1083 = vmatprep.subr.bf16.mxu0 0
    %1084 = vmatpush1.bf16.msra.mxu0 0
    %1085 = vmatprep.mubr.bf16.mxu0 0
    %1086 = vmatmul.mubr.bf16.gmra.mrb[0].mxu0 %v996
    %v1087 = vpop.f32.mrb[0].mxu0
    %v1088 = vadd.f32 0.0, %v1087
    %v1089 = vpop.f32.mrb[0].mxu0
    %v1090 = vadd.f32 0.0, %v1089
    %v1091 = vpop.f32.mrb[0].mxu0
    %v1092 = vadd.f32 0.0, %v1091
    %v1093 = vpop.f32.mrb[0].mxu0
    %v1094 = vadd.f32 0.0, %v1093
    %1095 = vdwg.mxu0
    %v1096 = vunpack.c.l.bf16 %v1006
    %v1097 = vunpack.c.l.bf16 %v1007
    %v1098 = vunpack.c.l.bf16 %v1008
    %v1099 = vunpack.c.l.bf16 %v1009
    %v1100 = vunpack.c.h.bf16 %v1006
    %v1101 = vunpack.c.h.bf16 %v1007
    %v1102 = vunpack.c.h.bf16 %v1008
    %v1103 = vunpack.c.h.bf16 %v1009
    %v1104 = vadd.f32 %v1096, %v1045
    %v1105 = vadd.f32 %v1097, %v1047
    %v1106 = vadd.f32 %v1098, %v1088
    %v1107 = vadd.f32 %v1099, %v1090
    %v1108 = vadd.f32 %v1100, %v1049
    %v1109 = vadd.f32 %v1101, %v1051
    %v1110 = vadd.f32 %v1102, %v1092
    %v1111 = vadd.f32 %v1103, %v1094
    %v1112 = vxor.u32 %v1104, 2147483648
    %v1113 = vxor.u32 %v1108, 2147483648
    %v1114 = vmul.f32 %v1112, 1.442695
    %v1115 = vpow.pop %v1114
    %v1116 = vmul.f32 %v1113, 1.442695
    %v1117 = vpow.pop %v1116
    %v1118 = vadd.f32 %v1115, 1.0
    %v1119 = vadd.f32 %v1117, 1.0
    %v1120 = vrcp.pop %v1118
    %v1121 = vmul.f32 1.0, %v1120
    %v1122 = vrcp.pop %v1119
    %v1123 = vmul.f32 1.0, %v1122
    %v1124 = vxor.u32 %v1105, 2147483648
    %v1125 = vxor.u32 %v1109, 2147483648
    %v1126 = vmul.f32 %v1124, 1.442695
    %v1127 = vpow.pop %v1126
    %v1128 = vmul.f32 %v1125, 1.442695
    %v1129 = vpow.pop %v1128
    %v1130 = vadd.f32 %v1127, 1.0
    %v1131 = vadd.f32 %v1129, 1.0
    %v1132 = vrcp.pop %v1130
    %v1133 = vmul.f32 1.0, %v1132
    %v1134 = vrcp.pop %v1131
    %v1135 = vmul.f32 1.0, %v1134
    %v1136 = vtanh.pop %v1106
    %v1137 = vtanh.pop %v1110
    %v1138 = vxor.u32 %v1107, 2147483648
    %v1139 = vxor.u32 %v1111, 2147483648
    %v1140 = vmul.f32 %v1138, 1.442695
    %v1141 = vpow.pop %v1140
    %v1142 = vmul.f32 %v1139, 1.442695
    %v1143 = vpow.pop %v1142
    %v1144 = vadd.f32 %v1141, 1.0
    %v1145 = vadd.f32 %v1143, 1.0
    %v1146 = vrcp.pop %v1144
    %v1147 = vmul.f32 1.0, %v1146
    %v1148 = vrcp.pop %v1145
    %v1149 = vmul.f32 1.0, %v1148
    %v1150 = vmul.f32 %v1133, %v990
    %v1151 = vmul.f32 %v1135, %v991
    %v1152 = vmul.f32 %v1121, %v1136
    %v1153 = vmul.f32 %v1123, %v1137
    %v1154 = vadd.f32 %v1150, %v1152
    %v1155 = vadd.f32 %v1151, %v1153
    %v1156 = vtanh.pop %v1154
    %v1157 = vtanh.pop %v1155
    %v1158 = vmul.f32 %v1147, %v1156
    %v1159 = vmul.f32 %v1149, %v1157
    %v1160 = vpack.c.bf16 %v1159, %v1158
    %v1162 = vunpack.c.l.b16 %v1160
    %v1163 = vunpack.c.h.b16 %v1160
    %v1164 = vpack.c.b16 %v1162, %v1162
    %v1165 = vpack.c.b16 %v1163, %v1163
    %s1168 = scalar_lea.vmem [#allocation13], 8
    %1169 = vst [vmem:[%s1168] sm:$0xf] %v1164
    %1170 = vst [vmem:[%s1168 + $0x4] sm:$0xf] %v1165
    %v1171 = vld [vmem:[#allocation4 + $0x40] sm:$0xff]
    %v1172 = vld [vmem:[#allocation4 + $0x48] sm:$0xff]
    %v1173 = vld [vmem:[#allocation4 + $0x50] sm:$0xff]
    %v1174 = vld [vmem:[#allocation4 + $0x58] sm:$0xff]
    %1175 = vmatprep.subr.bf16.mxu0 %v783
    %1176 = vmatpush1.bf16.msra.mxu0 %v782
    %1177 = vmatprep.subr.bf16.mxu0 %v787
    %1178 = vmatpush1.bf16.msra.mxu0 %v786
    %1179 = vmatprep.subr.bf16.mxu0 %v791
    %1180 = vmatpush1.bf16.msra.mxu0 %v790
    %1181 = vmatprep.subr.bf16.mxu0 %v795
    %1182 = vmatpush1.bf16.msra.mxu0 %v794
    %1183 = vmatprep.subr.bf16.mxu0 %v799
    %1184 = vmatpush1.bf16.msra.mxu0 %v798
    %1185 = vmatprep.subr.bf16.mxu0 %v803
    %1186 = vmatpush1.bf16.msra.mxu0 %v802
    %1187 = vmatprep.subr.bf16.mxu0 %v807
    %1188 = vmatpush1.bf16.msra.mxu0 %v806
    %1189 = vmatprep.subr.bf16.mxu0 %v811
    %1190 = vmatpush1.bf16.msra.mxu0 %v810
    %1191 = vmatprep.subr.bf16.mxu0 0
    %1192 = vmatpush1.bf16.msra.mxu0 0
    %1193 = vmatprep.subr.bf16.mxu0 0
    %1194 = vmatpush1.bf16.msra.mxu0 0
    %1195 = vmatprep.subr.bf16.mxu0 0
    %1196 = vmatpush1.bf16.msra.mxu0 0
    %1197 = vmatprep.subr.bf16.mxu0 0
    %1198 = vmatpush1.bf16.msra.mxu0 0
    %1199 = vmatprep.subr.bf16.mxu0 0
    %1200 = vmatpush1.bf16.msra.mxu0 0
    %1201 = vmatprep.subr.bf16.mxu0 0
    %1202 = vmatpush1.bf16.msra.mxu0 0
    %1203 = vmatprep.subr.bf16.mxu0 0
    %1204 = vmatpush1.bf16.msra.mxu0 0
    %1205 = vmatprep.subr.bf16.mxu0 0
    %1206 = vmatpush1.bf16.msra.mxu0 0
    %1207 = vmatprep.mubr.bf16.mxu0 0
    %1208 = vmatmul.mubr.bf16.gmra.mrb[0].mxu0 %v1160
    %v1209 = vpop.f32.mrb[0].mxu0
    %v1210 = vadd.f32 0.0, %v1209
    %v1211 = vpop.f32.mrb[0].mxu0
    %v1212 = vadd.f32 0.0, %v1211
    %v1213 = vpop.f32.mrb[0].mxu0
    %v1214 = vadd.f32 0.0, %v1213
    %v1215 = vpop.f32.mrb[0].mxu0
    %v1216 = vadd.f32 0.0, %v1215
    %1217 = vdwg.mxu0
    %1218 = vmatprep.subr.bf16.mxu0 %v785
    %1219 = vmatpush1.bf16.msra.mxu0 %v784
    %1220 = vmatprep.subr.bf16.mxu0 %v789
    %1221 = vmatpush1.bf16.msra.mxu0 %v788
    %1222 = vmatprep.subr.bf16.mxu0 %v793
    %1223 = vmatpush1.bf16.msra.mxu0 %v792
    %1224 = vmatprep.subr.bf16.mxu0 %v797
    %1225 = vmatpush1.bf16.msra.mxu0 %v796
    %1226 = vmatprep.subr.bf16.mxu0 %v801
    %1227 = vmatpush1.bf16.msra.mxu0 %v800
    %1228 = vmatprep.subr.bf16.mxu0 %v805
    %1229 = vmatpush1.bf16.msra.mxu0 %v804
    %1230 = vmatprep.subr.bf16.mxu0 %v809
    %1231 = vmatpush1.bf16.msra.mxu0 %v808
    %1232 = vmatprep.subr.bf16.mxu0 %v813
    %1233 = vmatpush1.bf16.msra.mxu0 %v812
    %1234 = vmatprep.subr.bf16.mxu0 0
    %1235 = vmatpush1.bf16.msra.mxu0 0
    %1236 = vmatprep.subr.bf16.mxu0 0
    %1237 = vmatpush1.bf16.msra.mxu0 0
    %1238 = vmatprep.subr.bf16.mxu0 0
    %1239 = vmatpush1.bf16.msra.mxu0 0
    %1240 = vmatprep.subr.bf16.mxu0 0
    %1241 = vmatpush1.bf16.msra.mxu0 0
    %1242 = vmatprep.subr.bf16.mxu0 0
    %1243 = vmatpush1.bf16.msra.mxu0 0
    %1244 = vmatprep.subr.bf16.mxu0 0
    %1245 = vmatpush1.bf16.msra.mxu0 0
    %1246 = vmatprep.subr.bf16.mxu0 0
    %1247 = vmatpush1.bf16.msra.mxu0 0
    %1248 = vmatprep.subr.bf16.mxu0 0
    %1249 = vmatpush1.bf16.msra.mxu0 0
    %1250 = vmatprep.mubr.bf16.mxu0 0
    %1251 = vmatmul.mubr.bf16.gmra.mrb[0].mxu0 %v1160
    %v1252 = vpop.f32.mrb[0].mxu0
    %v1253 = vadd.f32 0.0, %v1252
    %v1254 = vpop.f32.mrb[0].mxu0
    %v1255 = vadd.f32 0.0, %v1254
    %v1256 = vpop.f32.mrb[0].mxu0
    %v1257 = vadd.f32 0.0, %v1256
    %v1258 = vpop.f32.mrb[0].mxu0
    %v1259 = vadd.f32 0.0, %v1258
    %1260 = vdwg.mxu0
    %v1261 = vunpack.c.l.bf16 %v1171
    %v1262 = vunpack.c.l.bf16 %v1172
    %v1263 = vunpack.c.l.bf16 %v1173
    %v1264 = vunpack.c.l.bf16 %v1174
    %v1265 = vunpack.c.h.bf16 %v1171
    %v1266 = vunpack.c.h.bf16 %v1172
    %v1267 = vunpack.c.h.bf16 %v1173
    %v1268 = vunpack.c.h.bf16 %v1174
    %v1269 = vadd.f32 %v1261, %v1210
    %v1270 = vadd.f32 %v1262, %v1212
    %v1271 = vadd.f32 %v1263, %v1253
    %v1272 = vadd.f32 %v1264, %v1255
    %v1273 = vadd.f32 %v1265, %v1214
    %v1274 = vadd.f32 %v1266, %v1216
    %v1275 = vadd.f32 %v1267, %v1257
    %v1276 = vadd.f32 %v1268, %v1259
    %v1277 = vxor.u32 %v1269, 2147483648
    %v1278 = vxor.u32 %v1273, 2147483648
    %v1279 = vmul.f32 %v1277, 1.442695
    %v1280 = vpow.pop %v1279
    %v1281 = vmul.f32 %v1278, 1.442695
    %v1282 = vpow.pop %v1281
    %v1283 = vadd.f32 %v1280, 1.0
    %v1284 = vadd.f32 %v1282, 1.0
    %v1285 = vrcp.pop %v1283
    %v1286 = vmul.f32 1.0, %v1285
    %v1287 = vrcp.pop %v1284
    %v1288 = vmul.f32 1.0, %v1287
    %v1289 = vxor.u32 %v1270, 2147483648
    %v1290 = vxor.u32 %v1274, 2147483648
    %v1291 = vmul.f32 %v1289, 1.442695
    %v1292 = vpow.pop %v1291
    %v1293 = vmul.f32 %v1290, 1.442695
    %v1294 = vpow.pop %v1293
    %v1295 = vadd.f32 %v1292, 1.0
    %v1296 = vadd.f32 %v1294, 1.0
    %v1297 = vrcp.pop %v1295
    %v1298 = vmul.f32 1.0, %v1297
    %v1299 = vrcp.pop %v1296
    %v1300 = vmul.f32 1.0, %v1299
    %v1301 = vtanh.pop %v1271
    %v1302 = vtanh.pop %v1275
    %v1303 = vxor.u32 %v1272, 2147483648
    %v1304 = vxor.u32 %v1276, 2147483648
    %v1305 = vmul.f32 %v1303, 1.442695
    %v1306 = vpow.pop %v1305
    %v1307 = vmul.f32 %v1304, 1.442695
    %v1308 = vpow.pop %v1307
    %v1309 = vadd.f32 %v1306, 1.0
    %v1310 = vadd.f32 %v1308, 1.0
    %v1311 = vrcp.pop %v1309
    %v1312 = vmul.f32 1.0, %v1311
    %v1313 = vrcp.pop %v1310
    %v1314 = vmul.f32 1.0, %v1313
    %v1315 = vmul.f32 %v1298, %v1154
    %v1316 = vmul.f32 %v1300, %v1155
    %v1317 = vmul.f32 %v1286, %v1301
    %v1318 = vmul.f32 %v1288, %v1302
    %v1319 = vadd.f32 %v1315, %v1317
    %v1320 = vadd.f32 %v1316, %v1318
    %v1321 = vtanh.pop %v1319
    %v1322 = vtanh.pop %v1320
    %v1323 = vmul.f32 %v1312, %v1321
    %v1324 = vmul.f32 %v1314, %v1322
    %v1325 = vpack.c.bf16 %v1324, %v1323
    %v1327 = vunpack.c.l.b16 %v1325
    %v1328 = vunpack.c.h.b16 %v1325
    %v1329 = vpack.c.b16 %v1327, %v1327
    %v1330 = vpack.c.b16 %v1328, %v1328
    %s1333 = scalar_lea.vmem [#allocation13], 16
    %1334 = vst [vmem:[%s1333] sm:$0xf] %v1329
    %1335 = vst [vmem:[%s1333 + $0x4] sm:$0xf] %v1330
    %v1336 = vld [vmem:[#allocation4 + $0x60] sm:$0xff]
    %v1337 = vld [vmem:[#allocation4 + $0x68] sm:$0xff]
    %v1338 = vld [vmem:[#allocation4 + $0x70] sm:$0xff]
    %v1339 = vld [vmem:[#allocation4 + $0x78] sm:$0xff]
    %1340 = vmatprep.subr.bf16.mxu0 %v783
    %1341 = vmatpush1.bf16.msra.mxu0 %v782
    %1342 = vmatprep.subr.bf16.mxu0 %v787
    %1343 = vmatpush1.bf16.msra.mxu0 %v786
    %1344 = vmatprep.subr.bf16.mxu0 %v791
    %1345 = vmatpush1.bf16.msra.mxu0 %v790
    %1346 = vmatprep.subr.bf16.mxu0 %v795
    %1347 = vmatpush1.bf16.msra.mxu0 %v794
    %1348 = vmatprep.subr.bf16.mxu0 %v799
    %1349 = vmatpush1.bf16.msra.mxu0 %v798
    %1350 = vmatprep.subr.bf16.mxu0 %v803
    %1351 = vmatpush1.bf16.msra.mxu0 %v802
    %1352 = vmatprep.subr.bf16.mxu0 %v807
    %1353 = vmatpush1.bf16.msra.mxu0 %v806
    %1354 = vmatprep.subr.bf16.mxu0 %v811
    %1355 = vmatpush1.bf16.msra.mxu0 %v810
    %1356 = vmatprep.subr.bf16.mxu0 0
    %1357 = vmatpush1.bf16.msra.mxu0 0
    %1358 = vmatprep.subr.bf16.mxu0 0
    %1359 = vmatpush1.bf16.msra.mxu0 0
    %1360 = vmatprep.subr.bf16.mxu0 0
    %1361 = vmatpush1.bf16.msra.mxu0 0
    %1362 = vmatprep.subr.bf16.mxu0 0
    %1363 = vmatpush1.bf16.msra.mxu0 0
    %1364 = vmatprep.subr.bf16.mxu0 0
    %1365 = vmatpush1.bf16.msra.mxu0 0
    %1366 = vmatprep.subr.bf16.mxu0 0
    %1367 = vmatpush1.bf16.msra.mxu0 0
    %1368 = vmatprep.subr.bf16.mxu0 0
    %1369 = vmatpush1.bf16.msra.mxu0 0
    %1370 = vmatprep.subr.bf16.mxu0 0
    %1371 = vmatpush1.bf16.msra.mxu0 0
    %1372 = vmatprep.mubr.bf16.mxu0 0
    %1373 = vmatmul.mubr.bf16.gmra.mrb[0].mxu0 %v1325
    %v1374 = vpop.f32.mrb[0].mxu0
    %v1375 = vadd.f32 0.0, %v1374
    %v1376 = vpop.f32.mrb[0].mxu0
    %v1377 = vadd.f32 0.0, %v1376
    %v1378 = vpop.f32.mrb[0].mxu0
    %v1379 = vadd.f32 0.0, %v1378
    %v1380 = vpop.f32.mrb[0].mxu0
    %v1381 = vadd.f32 0.0, %v1380
    %1382 = vdwg.mxu0
    %1383 = vmatprep.subr.bf16.mxu0 %v785
    %1384 = vmatpush1.bf16.msra.mxu0 %v784
    %1385 = vmatprep.subr.bf16.mxu0 %v789
    %1386 = vmatpush1.bf16.msra.mxu0 %v788
    %1387 = vmatprep.subr.bf16.mxu0 %v793
    %1388 = vmatpush1.bf16.msra.mxu0 %v792
    %1389 = vmatprep.subr.bf16.mxu0 %v797
    %1390 = vmatpush1.bf16.msra.mxu0 %v796
    %1391 = vmatprep.subr.bf16.mxu0 %v801
    %1392 = vmatpush1.bf16.msra.mxu0 %v800
    %1393 = vmatprep.subr.bf16.mxu0 %v805
    %1394 = vmatpush1.bf16.msra.mxu0 %v804
    %1395 = vmatprep.subr.bf16.mxu0 %v809
    %1396 = vmatpush1.bf16.msra.mxu0 %v808
    %1397 = vmatprep.subr.bf16.mxu0 %v813
    %1398 = vmatpush1.bf16.msra.mxu0 %v812
    %1399 = vmatprep.subr.bf16.mxu0 0
    %1400 = vmatpush1.bf16.msra.mxu0 0
    %1401 = vmatprep.subr.bf16.mxu0 0
    %1402 = vmatpush1.bf16.msra.mxu0 0
    %1403 = vmatprep.subr.bf16.mxu0 0
    %1404 = vmatpush1.bf16.msra.mxu0 0
    %1405 = vmatprep.subr.bf16.mxu0 0
    %1406 = vmatpush1.bf16.msra.mxu0 0
    %1407 = vmatprep.subr.bf16.mxu0 0
    %1408 = vmatpush1.bf16.msra.mxu0 0
    %1409 = vmatprep.subr.bf16.mxu0 0
    %1410 = vmatpush1.bf16.msra.mxu0 0
    %1411 = vmatprep.subr.bf16.mxu0 0
    %1412 = vmatpush1.bf16.msra.mxu0 0
    %1413 = vmatprep.subr.bf16.mxu0 0
    %1414 = vmatpush1.bf16.msra.mxu0 0
    %1415 = vmatprep.mubr.bf16.mxu0 0
    %1416 = vmatmul.mubr.bf16.gmra.mrb[0].mxu0 %v1325
    %v1417 = vpop.f32.mrb[0].mxu0
    %v1418 = vadd.f32 0.0, %v1417
    %v1419 = vpop.f32.mrb[0].mxu0
    %v1420 = vadd.f32 0.0, %v1419
    %v1421 = vpop.f32.mrb[0].mxu0
    %v1422 = vadd.f32 0.0, %v1421
    %v1423 = vpop.f32.mrb[0].mxu0
    %v1424 = vadd.f32 0.0, %v1423
    %1425 = vdwg.mxu0
    %v1426 = vunpack.c.l.bf16 %v1336
    %v1427 = vunpack.c.l.bf16 %v1337
    %v1428 = vunpack.c.l.bf16 %v1338
    %v1429 = vunpack.c.l.bf16 %v1339
    %v1430 = vunpack.c.h.bf16 %v1336
    %v1431 = vunpack.c.h.bf16 %v1337
    %v1432 = vunpack.c.h.bf16 %v1338
    %v1433 = vunpack.c.h.bf16 %v1339
    %v1434 = vadd.f32 %v1426, %v1375
    %v1435 = vadd.f32 %v1427, %v1377
    %v1436 = vadd.f32 %v1428, %v1418
    %v1437 = vadd.f32 %v1429, %v1420
    %v1438 = vadd.f32 %v1430, %v1379
    %v1439 = vadd.f32 %v1431, %v1381
    %v1440 = vadd.f32 %v1432, %v1422
    %v1441 = vadd.f32 %v1433, %v1424
    %v1442 = vxor.u32 %v1434, 2147483648
    %v1443 = vxor.u32 %v1438, 2147483648
    %v1444 = vmul.f32 %v1442, 1.442695
    %v1445 = vpow.pop %v1444
    %v1446 = vmul.f32 %v1443, 1.442695
    %v1447 = vpow.pop %v1446
    %v1448 = vadd.f32 %v1445, 1.0
    %v1449 = vadd.f32 %v1447, 1.0
    %v1450 = vrcp.pop %v1448
    %v1451 = vmul.f32 1.0, %v1450
    %v1452 = vrcp.pop %v1449
    %v1453 = vmul.f32 1.0, %v1452
    %v1454 = vxor.u32 %v1435, 2147483648
    %v1455 = vxor.u32 %v1439, 2147483648
    %v1456 = vmul.f32 %v1454, 1.442695
    %v1457 = vpow.pop %v1456
    %v1458 = vmul.f32 %v1455, 1.442695
    %v1459 = vpow.pop %v1458
    %v1460 = vadd.f32 %v1457, 1.0
    %v1461 = vadd.f32 %v1459, 1.0
    %v1462 = vrcp.pop %v1460
    %v1463 = vmul.f32 1.0, %v1462
    %v1464 = vrcp.pop %v1461
    %v1465 = vmul.f32 1.0, %v1464
    %v1466 = vtanh.pop %v1436
    %v1467 = vtanh.pop %v1440
    %v1468 = vxor.u32 %v1437, 2147483648
    %v1469 = vxor.u32 %v1441, 2147483648
    %v1470 = vmul.f32 %v1468, 1.442695
    %v1471 = vpow.pop %v1470
    %v1472 = vmul.f32 %v1469, 1.442695
    %v1473 = vpow.pop %v1472
    %v1474 = vadd.f32 %v1471, 1.0
    %v1475 = vadd.f32 %v1473, 1.0
    %v1476 = vrcp.pop %v1474
    %v1477 = vmul.f32 1.0, %v1476
    %v1478 = vrcp.pop %v1475
    %v1479 = vmul.f32 1.0, %v1478
    %v1480 = vmul.f32 %v1463, %v1319
    %v1481 = vmul.f32 %v1465, %v1320
    %v1482 = vmul.f32 %v1451, %v1466
    %v1483 = vmul.f32 %v1453, %v1467
    %v1484 = vadd.f32 %v1480, %v1482
    %v1485 = vadd.f32 %v1481, %v1483
    %v1486 = vtanh.pop %v1484
    %v1487 = vtanh.pop %v1485
    %v1488 = vmul.f32 %v1477, %v1486
    %v1489 = vmul.f32 %v1479, %v1487
    %v1490 = vpack.c.bf16 %v1489, %v1488
    %v1492 = vunpack.c.l.b16 %v1490
    %v1493 = vunpack.c.h.b16 %v1490
    %v1494 = vpack.c.b16 %v1492, %v1492
    %v1495 = vpack.c.b16 %v1493, %v1493
    %s1498 = scalar_lea.vmem [#allocation13], 24
    %1499 = vst [vmem:[%s1498] sm:$0xf] %v1494
    %1500 = vst [vmem:[%s1498 + $0x4] sm:$0xf] %v1495
    %v1501 = vld [vmem:[#allocation4 + $0x80] sm:$0xff]
    %v1502 = vld [vmem:[#allocation4 + $0x88] sm:$0xff]
    %v1503 = vld [vmem:[#allocation4 + $0x90] sm:$0xff]
    %v1504 = vld [vmem:[#allocation4 + $0x98] sm:$0xff]
    %1505 = vmatprep.subr.bf16.mxu0 %v783
    %1506 = vmatpush1.bf16.msra.mxu0 %v782
    %1507 = vmatprep.subr.bf16.mxu0 %v787
    %1508 = vmatpush1.bf16.msra.mxu0 %v786
    %1509 = vmatprep.subr.bf16.mxu0 %v791
    %1510 = vmatpush1.bf16.msra.mxu0 %v790
    %1511 = vmatprep.subr.bf16.mxu0 %v795
    %1512 = vmatpush1.bf16.msra.mxu0 %v794
    %1513 = vmatprep.subr.bf16.mxu0 %v799
    %1514 = vmatpush1.bf16.msra.mxu0 %v798
    %1515 = vmatprep.subr.bf16.mxu0 %v803
    %1516 = vmatpush1.bf16.msra.mxu0 %v802
    %1517 = vmatprep.subr.bf16.mxu0 %v807
    %1518 = vmatpush1.bf16.msra.mxu0 %v806
    %1519 = vmatprep.subr.bf16.mxu0 %v811
    %1520 = vmatpush1.bf16.msra.mxu0 %v810
    %1521 = vmatprep.subr.bf16.mxu0 0
    %1522 = vmatpush1.bf16.msra.mxu0 0
    %1523 = vmatprep.subr.bf16.mxu0 0
    %1524 = vmatpush1.bf16.msra.mxu0 0
    %1525 = vmatprep.subr.bf16.mxu0 0
    %1526 = vmatpush1.bf16.msra.mxu0 0
    %1527 = vmatprep.subr.bf16.mxu0 0
    %1528 = vmatpush1.bf16.msra.mxu0 0
    %1529 = vmatprep.subr.bf16.mxu0 0
    %1530 = vmatpush1.bf16.msra.mxu0 0
    %1531 = vmatprep.subr.bf16.mxu0 0
    %1532 = vmatpush1.bf16.msra.mxu0 0
    %1533 = vmatprep.subr.bf16.mxu0 0
    %1534 = vmatpush1.bf16.msra.mxu0 0
    %1535 = vmatprep.subr.bf16.mxu0 0
    %1536 = vmatpush1.bf16.msra.mxu0 0
    %1537 = vmatprep.mubr.bf16.mxu0 0
    %1538 = vmatmul.mubr.bf16.gmra.mrb[0].mxu0 %v1490
    %v1539 = vpop.f32.mrb[0].mxu0
    %v1540 = vadd.f32 0.0, %v1539
    %v1541 = vpop.f32.mrb[0].mxu0
    %v1542 = vadd.f32 0.0, %v1541
    %v1543 = vpop.f32.mrb[0].mxu0
    %v1544 = vadd.f32 0.0, %v1543
    %v1545 = vpop.f32.mrb[0].mxu0
    %v1546 = vadd.f32 0.0, %v1545
    %1547 = vdwg.mxu0
    %1548 = vmatprep.subr.bf16.mxu0 %v785
    %1549 = vmatpush1.bf16.msra.mxu0 %v784
    %1550 = vmatprep.subr.bf16.mxu0 %v789
    %1551 = vmatpush1.bf16.msra.mxu0 %v788
    %1552 = vmatprep.subr.bf16.mxu0 %v793
    %1553 = vmatpush1.bf16.msra.mxu0 %v792
    %1554 = vmatprep.subr.bf16.mxu0 %v797
    %1555 = vmatpush1.bf16.msra.mxu0 %v796
    %1556 = vmatprep.subr.bf16.mxu0 %v801
    %1557 = vmatpush1.bf16.msra.mxu0 %v800
    %1558 = vmatprep.subr.bf16.mxu0 %v805
    %1559 = vmatpush1.bf16.msra.mxu0 %v804
    %1560 = vmatprep.subr.bf16.mxu0 %v809
    %1561 = vmatpush1.bf16.msra.mxu0 %v808
    %1562 = vmatprep.subr.bf16.mxu0 %v813
    %1563 = vmatpush1.bf16.msra.mxu0 %v812
    %1564 = vmatprep.subr.bf16.mxu0 0
    %1565 = vmatpush1.bf16.msra.mxu0 0
    %1566 = vmatprep.subr.bf16.mxu0 0
    %1567 = vmatpush1.bf16.msra.mxu0 0
    %1568 = vmatprep.subr.bf16.mxu0 0
    %1569 = vmatpush1.bf16.msra.mxu0 0
    %1570 = vmatprep.subr.bf16.mxu0 0
    %1571 = vmatpush1.bf16.msra.mxu0 0
    %1572 = vmatprep.subr.bf16.mxu0 0
    %1573 = vmatpush1.bf16.msra.mxu0 0
    %1574 = vmatprep.subr.bf16.mxu0 0
    %1575 = vmatpush1.bf16.msra.mxu0 0
    %1576 = vmatprep.subr.bf16.mxu0 0
    %1577 = vmatpush1.bf16.msra.mxu0 0
    %1578 = vmatprep.subr.bf16.mxu0 0
    %1579 = vmatpush1.bf16.msra.mxu0 0
    %1580 = vmatprep.mubr.bf16.mxu0 0
    %1581 = vmatmul.mubr.bf16.gmra.mrb[0].mxu0 %v1490
    %v1582 = vpop.f32.mrb[0].mxu0
    %v1583 = vadd.f32 0.0, %v1582
    %v1584 = vpop.f32.mrb[0].mxu0
    %v1585 = vadd.f32 0.0, %v1584
    %v1586 = vpop.f32.mrb[0].mxu0
    %v1587 = vadd.f32 0.0, %v1586
    %v1588 = vpop.f32.mrb[0].mxu0
    %v1589 = vadd.f32 0.0, %v1588
    %1590 = vdwg.mxu0
    %v1591 = vunpack.c.l.bf16 %v1501
    %v1592 = vunpack.c.l.bf16 %v1502
    %v1593 = vunpack.c.l.bf16 %v1503
    %v1594 = vunpack.c.l.bf16 %v1504
    %v1595 = vunpack.c.h.bf16 %v1501
    %v1596 = vunpack.c.h.bf16 %v1502
    %v1597 = vunpack.c.h.bf16 %v1503
    %v1598 = vunpack.c.h.bf16 %v1504
    %v1599 = vadd.f32 %v1591, %v1540
    %v1600 = vadd.f32 %v1592, %v1542
    %v1601 = vadd.f32 %v1593, %v1583
    %v1602 = vadd.f32 %v1594, %v1585
    %v1603 = vadd.f32 %v1595, %v1544
    %v1604 = vadd.f32 %v1596, %v1546
    %v1605 = vadd.f32 %v1597, %v1587
    %v1606 = vadd.f32 %v1598, %v1589
    %v1607 = vxor.u32 %v1599, 2147483648
    %v1608 = vxor.u32 %v1603, 2147483648
    %v1609 = vmul.f32 %v1607, 1.442695
    %v1610 = vpow.pop %v1609
    %v1611 = vmul.f32 %v1608, 1.442695
    %v1612 = vpow.pop %v1611
    %v1613 = vadd.f32 %v1610, 1.0
    %v1614 = vadd.f32 %v1612, 1.0
    %v1615 = vrcp.pop %v1613
    %v1616 = vmul.f32 1.0, %v1615
    %v1617 = vrcp.pop %v1614
    %v1618 = vmul.f32 1.0, %v1617
    %v1619 = vxor.u32 %v1600, 2147483648
    %v1620 = vxor.u32 %v1604, 2147483648
    %v1621 = vmul.f32 %v1619, 1.442695
    %v1622 = vpow.pop %v1621
    %v1623 = vmul.f32 %v1620, 1.442695
    %v1624 = vpow.pop %v1623
    %v1625 = vadd.f32 %v1622, 1.0
    %v1626 = vadd.f32 %v1624, 1.0
    %v1627 = vrcp.pop %v1625
    %v1628 = vmul.f32 1.0, %v1627
    %v1629 = vrcp.pop %v1626
    %v1630 = vmul.f32 1.0, %v1629
    %v1631 = vtanh.pop %v1601
    %v1632 = vtanh.pop %v1605
    %v1633 = vxor.u32 %v1602, 2147483648
    %v1634 = vxor.u32 %v1606, 2147483648
    %v1635 = vmul.f32 %v1633, 1.442695
    %v1636 = vpow.pop %v1635
    %v1637 = vmul.f32 %v1634, 1.442695
    %v1638 = vpow.pop %v1637
    %v1639 = vadd.f32 %v1636, 1.0
    %v1640 = vadd.f32 %v1638, 1.0
    %v1641 = vrcp.pop %v1639
    %v1642 = vmul.f32 1.0, %v1641
    %v1643 = vrcp.pop %v1640
    %v1644 = vmul.f32 1.0, %v1643
    %v1645 = vmul.f32 %v1628, %v1484
    %v1646 = vmul.f32 %v1630, %v1485
    %v1647 = vmul.f32 %v1616, %v1631
    %v1648 = vmul.f32 %v1618, %v1632
    %v1649 = vadd.f32 %v1645, %v1647
    %v1650 = vadd.f32 %v1646, %v1648
    %v1651 = vtanh.pop %v1649
    %v1652 = vtanh.pop %v1650
    %v1653 = vmul.f32 %v1642, %v1651
    %v1654 = vmul.f32 %v1644, %v1652
    %v1655 = vpack.c.bf16 %v1654, %v1653
    %v1657 = vunpack.c.l.b16 %v1655
    %v1658 = vunpack.c.h.b16 %v1655
    %v1659 = vpack.c.b16 %v1657, %v1657
    %v1660 = vpack.c.b16 %v1658, %v1658
    %s1663 = scalar_lea.vmem [#allocation13], 32
    %1664 = vst [vmem:[%s1663] sm:$0xf] %v1659
    %1665 = vst [vmem:[%s1663 + $0x4] sm:$0xf] %v1660
    %v1666 = vld [vmem:[#allocation4 + $0xa0] sm:$0xff]
    %v1667 = vld [vmem:[#allocation4 + $0xa8] sm:$0xff]
    %v1668 = vld [vmem:[#allocation4 + $0xb0] sm:$0xff]
    %v1669 = vld [vmem:[#allocation4 + $0xb8] sm:$0xff]
    %1670 = vmatprep.subr.bf16.mxu0 %v783
    %1671 = vmatpush1.bf16.msra.mxu0 %v782
    %1672 = vmatprep.subr.bf16.mxu0 %v787
    %1673 = vmatpush1.bf16.msra.mxu0 %v786
    %1674 = vmatprep.subr.bf16.mxu0 %v791
    %1675 = vmatpush1.bf16.msra.mxu0 %v790
    %1676 = vmatprep.subr.bf16.mxu0 %v795
    %1677 = vmatpush1.bf16.msra.mxu0 %v794
    %1678 = vmatprep.subr.bf16.mxu0 %v799
    %1679 = vmatpush1.bf16.msra.mxu0 %v798
    %1680 = vmatprep.subr.bf16.mxu0 %v803
    %1681 = vmatpush1.bf16.msra.mxu0 %v802
    %1682 = vmatprep.subr.bf16.mxu0 %v807
    %1683 = vmatpush1.bf16.msra.mxu0 %v806
    %1684 = vmatprep.subr.bf16.mxu0 %v811
    %1685 = vmatpush1.bf16.msra.mxu0 %v810
    %1686 = vmatprep.subr.bf16.mxu0 0
    %1687 = vmatpush1.bf16.msra.mxu0 0
    %1688 = vmatprep.subr.bf16.mxu0 0
    %1689 = vmatpush1.bf16.msra.mxu0 0
    %1690 = vmatprep.subr.bf16.mxu0 0
    %1691 = vmatpush1.bf16.msra.mxu0 0
    %1692 = vmatprep.subr.bf16.mxu0 0
    %1693 = vmatpush1.bf16.msra.mxu0 0
    %1694 = vmatprep.subr.bf16.mxu0 0
    %1695 = vmatpush1.bf16.msra.mxu0 0
    %1696 = vmatprep.subr.bf16.mxu0 0
    %1697 = vmatpush1.bf16.msra.mxu0 0
    %1698 = vmatprep.subr.bf16.mxu0 0
    %1699 = vmatpush1.bf16.msra.mxu0 0
    %1700 = vmatprep.subr.bf16.mxu0 0
    %1701 = vmatpush1.bf16.msra.mxu0 0
    %1702 = vmatprep.mubr.bf16.mxu0 0
    %1703 = vmatmul.mubr.bf16.gmra.mrb[0].mxu0 %v1655
    %v1704 = vpop.f32.mrb[0].mxu0
    %v1705 = vadd.f32 0.0, %v1704
    %v1706 = vpop.f32.mrb[0].mxu0
    %v1707 = vadd.f32 0.0, %v1706
    %v1708 = vpop.f32.mrb[0].mxu0
    %v1709 = vadd.f32 0.0, %v1708
    %v1710 = vpop.f32.mrb[0].mxu0
    %v1711 = vadd.f32 0.0, %v1710
    %1712 = vdwg.mxu0
    %1713 = vmatprep.subr.bf16.mxu0 %v785
    %1714 = vmatpush1.bf16.msra.mxu0 %v784
    %1715 = vmatprep.subr.bf16.mxu0 %v789
    %1716 = vmatpush1.bf16.msra.mxu0 %v788
    %1717 = vmatprep.subr.bf16.mxu0 %v793
    %1718 = vmatpush1.bf16.msra.mxu0 %v792
    %1719 = vmatprep.subr.bf16.mxu0 %v797
    %1720 = vmatpush1.bf16.msra.mxu0 %v796
    %1721 = vmatprep.subr.bf16.mxu0 %v801
    %1722 = vmatpush1.bf16.msra.mxu0 %v800
    %1723 = vmatprep.subr.bf16.mxu0 %v805
    %1724 = vmatpush1.bf16.msra.mxu0 %v804
    %1725 = vmatprep.subr.bf16.mxu0 %v809
    %1726 = vmatpush1.bf16.msra.mxu0 %v808
    %1727 = vmatprep.subr.bf16.mxu0 %v813
    %1728 = vmatpush1.bf16.msra.mxu0 %v812
    %1729 = vmatprep.subr.bf16.mxu0 0
    %1730 = vmatpush1.bf16.msra.mxu0 0
    %1731 = vmatprep.subr.bf16.mxu0 0
    %1732 = vmatpush1.bf16.msra.mxu0 0
    %1733 = vmatprep.subr.bf16.mxu0 0
    %1734 = vmatpush1.bf16.msra.mxu0 0
    %1735 = vmatprep.subr.bf16.mxu0 0
    %1736 = vmatpush1.bf16.msra.mxu0 0
    %1737 = vmatprep.subr.bf16.mxu0 0
    %1738 = vmatpush1.bf16.msra.mxu0 0
    %1739 = vmatprep.subr.bf16.mxu0 0
    %1740 = vmatpush1.bf16.msra.mxu0 0
    %1741 = vmatprep.subr.bf16.mxu0 0
    %1742 = vmatpush1.bf16.msra.mxu0 0
    %1743 = vmatprep.subr.bf16.mxu0 0
    %1744 = vmatpush1.bf16.msra.mxu0 0
    %1745 = vmatprep.mubr.bf16.mxu0 0
    %1746 = vmatmul.mubr.bf16.gmra.mrb[0].mxu0 %v1655
    %v1747 = vpop.f32.mrb[0].mxu0
    %v1748 = vadd.f32 0.0, %v1747
    %v1749 = vpop.f32.mrb[0].mxu0
    %v1750 = vadd.f32 0.0, %v1749
    %v1751 = vpop.f32.mrb[0].mxu0
    %v1752 = vadd.f32 0.0, %v1751
    %v1753 = vpop.f32.mrb[0].mxu0
    %v1754 = vadd.f32 0.0, %v1753
    %1755 = vdwg.mxu0
    %v1756 = vunpack.c.l.bf16 %v1666
    %v1757 = vunpack.c.l.bf16 %v1667
    %v1758 = vunpack.c.l.bf16 %v1668
    %v1759 = vunpack.c.l.bf16 %v1669
    %v1760 = vunpack.c.h.bf16 %v1666
    %v1761 = vunpack.c.h.bf16 %v1667
    %v1762 = vunpack.c.h.bf16 %v1668
    %v1763 = vunpack.c.h.bf16 %v1669
    %v1764 = vadd.f32 %v1756, %v1705
    %v1765 = vadd.f32 %v1757, %v1707
    %v1766 = vadd.f32 %v1758, %v1748
    %v1767 = vadd.f32 %v1759, %v1750
    %v1768 = vadd.f32 %v1760, %v1709
    %v1769 = vadd.f32 %v1761, %v1711
    %v1770 = vadd.f32 %v1762, %v1752
    %v1771 = vadd.f32 %v1763, %v1754
    %v1772 = vxor.u32 %v1764, 2147483648
    %v1773 = vxor.u32 %v1768, 2147483648
    %v1774 = vmul.f32 %v1772, 1.442695
    %v1775 = vpow.pop %v1774
    %v1776 = vmul.f32 %v1773, 1.442695
    %v1777 = vpow.pop %v1776
    %v1778 = vadd.f32 %v1775, 1.0
    %v1779 = vadd.f32 %v1777, 1.0
    %v1780 = vrcp.pop %v1778
    %v1781 = vmul.f32 1.0, %v1780
    %v1782 = vrcp.pop %v1779
    %v1783 = vmul.f32 1.0, %v1782
    %v1784 = vxor.u32 %v1765, 2147483648
    %v1785 = vxor.u32 %v1769, 2147483648
    %v1786 = vmul.f32 %v1784, 1.442695
    %v1787 = vpow.pop %v1786
    %v1788 = vmul.f32 %v1785, 1.442695
    %v1789 = vpow.pop %v1788
    %v1790 = vadd.f32 %v1787, 1.0
    %v1791 = vadd.f32 %v1789, 1.0
    %v1792 = vrcp.pop %v1790
    %v1793 = vmul.f32 1.0, %v1792
    %v1794 = vrcp.pop %v1791
    %v1795 = vmul.f32 1.0, %v1794
    %v1796 = vtanh.pop %v1766
    %v1797 = vtanh.pop %v1770
    %v1798 = vxor.u32 %v1767, 2147483648
    %v1799 = vxor.u32 %v1771, 2147483648
    %v1800 = vmul.f32 %v1798, 1.442695
    %v1801 = vpow.pop %v1800
    %v1802 = vmul.f32 %v1799, 1.442695
    %v1803 = vpow.pop %v1802
    %v1804 = vadd.f32 %v1801, 1.0
    %v1805 = vadd.f32 %v1803, 1.0
    %v1806 = vrcp.pop %v1804
    %v1807 = vmul.f32 1.0, %v1806
    %v1808 = vrcp.pop %v1805
    %v1809 = vmul.f32 1.0, %v1808
    %v1810 = vmul.f32 %v1793, %v1649
    %v1811 = vmul.f32 %v1795, %v1650
    %v1812 = vmul.f32 %v1781, %v1796
    %v1813 = vmul.f32 %v1783, %v1797
    %v1814 = vadd.f32 %v1810, %v1812
    %v1815 = vadd.f32 %v1811, %v1813
    %v1816 = vtanh.pop %v1814
    %v1817 = vtanh.pop %v1815
    %v1818 = vmul.f32 %v1807, %v1816
    %v1819 = vmul.f32 %v1809, %v1817
    %v1820 = vpack.c.bf16 %v1819, %v1818
    %v1822 = vunpack.c.l.b16 %v1820
    %v1823 = vunpack.c.h.b16 %v1820
    %v1824 = vpack.c.b16 %v1822, %v1822
    %v1825 = vpack.c.b16 %v1823, %v1823
    %s1828 = scalar_lea.vmem [#allocation13], 40
    %1829 = vst [vmem:[%s1828] sm:$0xf] %v1824
    %1830 = vst [vmem:[%s1828 + $0x4] sm:$0xf] %v1825
    %v1831 = vld [vmem:[#allocation4 + $0xc0] sm:$0xff]
    %v1832 = vld [vmem:[#allocation4 + $0xc8] sm:$0xff]
    %v1833 = vld [vmem:[#allocation4 + $0xd0] sm:$0xff]
    %v1834 = vld [vmem:[#allocation4 + $0xd8] sm:$0xff]
    %1835 = vmatprep.subr.bf16.mxu0 %v783
    %1836 = vmatpush1.bf16.msra.mxu0 %v782
    %1837 = vmatprep.subr.bf16.mxu0 %v787
    %1838 = vmatpush1.bf16.msra.mxu0 %v786
    %1839 = vmatprep.subr.bf16.mxu0 %v791
    %1840 = vmatpush1.bf16.msra.mxu0 %v790
    %1841 = vmatprep.subr.bf16.mxu0 %v795
    %1842 = vmatpush1.bf16.msra.mxu0 %v794
    %1843 = vmatprep.subr.bf16.mxu0 %v799
    %1844 = vmatpush1.bf16.msra.mxu0 %v798
    %1845 = vmatprep.subr.bf16.mxu0 %v803
    %1846 = vmatpush1.bf16.msra.mxu0 %v802
    %1847 = vmatprep.subr.bf16.mxu0 %v807
    %1848 = vmatpush1.bf16.msra.mxu0 %v806
    %1849 = vmatprep.subr.bf16.mxu0 %v811
    %1850 = vmatpush1.bf16.msra.mxu0 %v810
    %1851 = vmatprep.subr.bf16.mxu0 0
    %1852 = vmatpush1.bf16.msra.mxu0 0
    %1853 = vmatprep.subr.bf16.mxu0 0
    %1854 = vmatpush1.bf16.msra.mxu0 0
    %1855 = vmatprep.subr.bf16.mxu0 0
    %1856 = vmatpush1.bf16.msra.mxu0 0
    %1857 = vmatprep.subr.bf16.mxu0 0
    %1858 = vmatpush1.bf16.msra.mxu0 0
    %1859 = vmatprep.subr.bf16.mxu0 0
    %1860 = vmatpush1.bf16.msra.mxu0 0
    %1861 = vmatprep.subr.bf16.mxu0 0
    %1862 = vmatpush1.bf16.msra.mxu0 0
    %1863 = vmatprep.subr.bf16.mxu0 0
    %1864 = vmatpush1.bf16.msra.mxu0 0
    %1865 = vmatprep.subr.bf16.mxu0 0
    %1866 = vmatpush1.bf16.msra.mxu0 0
    %1867 = vmatprep.mubr.bf16.mxu0 0
    %1868 = vmatmul.mubr.bf16.gmra.mrb[0].mxu0 %v1820
    %v1869 = vpop.f32.mrb[0].mxu0
    %v1870 = vadd.f32 0.0, %v1869
    %v1871 = vpop.f32.mrb[0].mxu0
    %v1872 = vadd.f32 0.0, %v1871
    %v1873 = vpop.f32.mrb[0].mxu0
    %v1874 = vadd.f32 0.0, %v1873
    %v1875 = vpop.f32.mrb[0].mxu0
    %v1876 = vadd.f32 0.0, %v1875
    %1877 = vdwg.mxu0
    %1878 = vmatprep.subr.bf16.mxu0 %v785
    %1879 = vmatpush1.bf16.msra.mxu0 %v784
    %1880 = vmatprep.subr.bf16.mxu0 %v789
    %1881 = vmatpush1.bf16.msra.mxu0 %v788
    %1882 = vmatprep.subr.bf16.mxu0 %v793
    %1883 = vmatpush1.bf16.msra.mxu0 %v792
    %1884 = vmatprep.subr.bf16.mxu0 %v797
    %1885 = vmatpush1.bf16.msra.mxu0 %v796
    %1886 = vmatprep.subr.bf16.mxu0 %v801
    %1887 = vmatpush1.bf16.msra.mxu0 %v800
    %1888 = vmatprep.subr.bf16.mxu0 %v805
    %1889 = vmatpush1.bf16.msra.mxu0 %v804
    %1890 = vmatprep.subr.bf16.mxu0 %v809
    %1891 = vmatpush1.bf16.msra.mxu0 %v808
    %1892 = vmatprep.subr.bf16.mxu0 %v813
    %1893 = vmatpush1.bf16.msra.mxu0 %v812
    %1894 = vmatprep.subr.bf16.mxu0 0
    %1895 = vmatpush1.bf16.msra.mxu0 0
    %1896 = vmatprep.subr.bf16.mxu0 0
    %1897 = vmatpush1.bf16.msra.mxu0 0
    %1898 = vmatprep.subr.bf16.mxu0 0
    %1899 = vmatpush1.bf16.msra.mxu0 0
    %1900 = vmatprep.subr.bf16.mxu0 0
    %1901 = vmatpush1.bf16.msra.mxu0 0
    %1902 = vmatprep.subr.bf16.mxu0 0
    %1903 = vmatpush1.bf16.msra.mxu0 0
    %1904 = vmatprep.subr.bf16.mxu0 0
    %1905 = vmatpush1.bf16.msra.mxu0 0
    %1906 = vmatprep.subr.bf16.mxu0 0
    %1907 = vmatpush1.bf16.msra.mxu0 0
    %1908 = vmatprep.subr.bf16.mxu0 0
    %1909 = vmatpush1.bf16.msra.mxu0 0
    %1910 = vmatprep.mubr.bf16.mxu0 0
    %1911 = vmatmul.mubr.bf16.gmra.mrb[0].mxu0 %v1820
    %v1912 = vpop.f32.mrb[0].mxu0
    %v1913 = vadd.f32 0.0, %v1912
    %v1914 = vpop.f32.mrb[0].mxu0
    %v1915 = vadd.f32 0.0, %v1914
    %v1916 = vpop.f32.mrb[0].mxu0
    %v1917 = vadd.f32 0.0, %v1916
    %v1918 = vpop.f32.mrb[0].mxu0
    %v1919 = vadd.f32 0.0, %v1918
    %1920 = vdwg.mxu0
    %v1921 = vunpack.c.l.bf16 %v1831
    %v1922 = vunpack.c.l.bf16 %v1832
    %v1923 = vunpack.c.l.bf16 %v1833
    %v1924 = vunpack.c.l.bf16 %v1834
    %v1925 = vunpack.c.h.bf16 %v1831
    %v1926 = vunpack.c.h.bf16 %v1832
    %v1927 = vunpack.c.h.bf16 %v1833
    %v1928 = vunpack.c.h.bf16 %v1834
    %v1929 = vadd.f32 %v1921, %v1870
    %v1930 = vadd.f32 %v1922, %v1872
    %v1931 = vadd.f32 %v1923, %v1913
    %v1932 = vadd.f32 %v1924, %v1915
    %v1933 = vadd.f32 %v1925, %v1874
    %v1934 = vadd.f32 %v1926, %v1876
    %v1935 = vadd.f32 %v1927, %v1917
    %v1936 = vadd.f32 %v1928, %v1919
    %v1937 = vxor.u32 %v1929, 2147483648
    %v1938 = vxor.u32 %v1933, 2147483648
    %v1939 = vmul.f32 %v1937, 1.442695
    %v1940 = vpow.pop %v1939
    %v1941 = vmul.f32 %v1938, 1.442695
    %v1942 = vpow.pop %v1941
    %v1943 = vadd.f32 %v1940, 1.0
    %v1944 = vadd.f32 %v1942, 1.0
    %v1945 = vrcp.pop %v1943
    %v1946 = vmul.f32 1.0, %v1945
    %v1947 = vrcp.pop %v1944
    %v1948 = vmul.f32 1.0, %v1947
    %v1949 = vxor.u32 %v1930, 2147483648
    %v1950 = vxor.u32 %v1934, 2147483648
    %v1951 = vmul.f32 %v1949, 1.442695
    %v1952 = vpow.pop %v1951
    %v1953 = vmul.f32 %v1950, 1.442695
    %v1954 = vpow.pop %v1953
    %v1955 = vadd.f32 %v1952, 1.0
    %v1956 = vadd.f32 %v1954, 1.0
    %v1957 = vrcp.pop %v1955
    %v1958 = vmul.f32 1.0, %v1957
    %v1959 = vrcp.pop %v1956
    %v1960 = vmul.f32 1.0, %v1959
    %v1961 = vtanh.pop %v1931
    %v1962 = vtanh.pop %v1935
    %v1963 = vxor.u32 %v1932, 2147483648
    %v1964 = vxor.u32 %v1936, 2147483648
    %v1965 = vmul.f32 %v1963, 1.442695
    %v1966 = vpow.pop %v1965
    %v1967 = vmul.f32 %v1964, 1.442695
    %v1968 = vpow.pop %v1967
    %v1969 = vadd.f32 %v1966, 1.0
    %v1970 = vadd.f32 %v1968, 1.0
    %v1971 = vrcp.pop %v1969
    %v1972 = vmul.f32 1.0, %v1971
    %v1973 = vrcp.pop %v1970
    %v1974 = vmul.f32 1.0, %v1973
    %v1975 = vmul.f32 %v1958, %v1814
    %v1976 = vmul.f32 %v1960, %v1815
    %v1977 = vmul.f32 %v1946, %v1961
    %v1978 = vmul.f32 %v1948, %v1962
    %v1979 = vadd.f32 %v1975, %v1977
    %v1980 = vadd.f32 %v1976, %v1978
    %v1981 = vtanh.pop %v1979
    %v1982 = vtanh.pop %v1980
    %v1983 = vmul.f32 %v1972, %v1981
    %v1984 = vmul.f32 %v1974, %v1982
    %v1985 = vpack.c.bf16 %v1984, %v1983
    %v1987 = vunpack.c.l.b16 %v1985
    %v1988 = vunpack.c.h.b16 %v1985
    %v1989 = vpack.c.b16 %v1987, %v1987
    %v1990 = vpack.c.b16 %v1988, %v1988
    %s1993 = scalar_lea.vmem [#allocation13], 48
    %1994 = vst [vmem:[%s1993] sm:$0xf] %v1989
    %1995 = vst [vmem:[%s1993 + $0x4] sm:$0xf] %v1990
    %v1996 = vld [vmem:[#allocation4 + $0xe0] sm:$0xff]
    %v1997 = vld [vmem:[#allocation4 + $0xe8] sm:$0xff]
    %v1998 = vld [vmem:[#allocation4 + $0xf0] sm:$0xff]
    %v1999 = vld [vmem:[#allocation4 + $0xf8] sm:$0xff]
    %2000 = vmatprep.subr.bf16.mxu0 %v783
    %2001 = vmatpush1.bf16.msra.mxu0 %v782
    %2002 = vmatprep.subr.bf16.mxu0 %v787
    %2003 = vmatpush1.bf16.msra.mxu0 %v786
    %2004 = vmatprep.subr.bf16.mxu0 %v791
    %2005 = vmatpush1.bf16.msra.mxu0 %v790
    %2006 = vmatprep.subr.bf16.mxu0 %v795
    %2007 = vmatpush1.bf16.msra.mxu0 %v794
    %2008 = vmatprep.subr.bf16.mxu0 %v799
    %2009 = vmatpush1.bf16.msra.mxu0 %v798
    %2010 = vmatprep.subr.bf16.mxu0 %v803
    %2011 = vmatpush1.bf16.msra.mxu0 %v802
    %2012 = vmatprep.subr.bf16.mxu0 %v807
    %2013 = vmatpush1.bf16.msra.mxu0 %v806
    %2014 = vmatprep.subr.bf16.mxu0 %v811
    %2015 = vmatpush1.bf16.msra.mxu0 %v810
    %2016 = vmatprep.subr.bf16.mxu0 0
    %2017 = vmatpush1.bf16.msra.mxu0 0
    %2018 = vmatprep.subr.bf16.mxu0 0
    %2019 = vmatpush1.bf16.msra.mxu0 0
    %2020 = vmatprep.subr.bf16.mxu0 0
    %2021 = vmatpush1.bf16.msra.mxu0 0
    %2022 = vmatprep.subr.bf16.mxu0 0
    %2023 = vmatpush1.bf16.msra.mxu0 0
    %2024 = vmatprep.subr.bf16.mxu0 0
    %2025 = vmatpush1.bf16.msra.mxu0 0
    %2026 = vmatprep.subr.bf16.mxu0 0
    %2027 = vmatpush1.bf16.msra.mxu0 0
    %2028 = vmatprep.subr.bf16.mxu0 0
    %2029 = vmatpush1.bf16.msra.mxu0 0
    %2030 = vmatprep.subr.bf16.mxu0 0
    %2031 = vmatpush1.bf16.msra.mxu0 0
    %2032 = vmatprep.mubr.bf16.mxu0 0
    %2033 = vmatmul.mubr.bf16.gmra.mrb[0].mxu0 %v1985
    %v2034 = vpop.f32.mrb[0].mxu0
    %v2035 = vadd.f32 0.0, %v2034
    %v2036 = vpop.f32.mrb[0].mxu0
    %v2037 = vadd.f32 0.0, %v2036
    %v2038 = vpop.f32.mrb[0].mxu0
    %v2039 = vadd.f32 0.0, %v2038
    %v2040 = vpop.f32.mrb[0].mxu0
    %v2041 = vadd.f32 0.0, %v2040
    %2042 = vdwg.mxu0
    %2043 = vmatprep.subr.bf16.mxu0 %v785
    %2044 = vmatpush1.bf16.msra.mxu0 %v784
    %2045 = vmatprep.subr.bf16.mxu0 %v789
    %2046 = vmatpush1.bf16.msra.mxu0 %v788
    %2047 = vmatprep.subr.bf16.mxu0 %v793
    %2048 = vmatpush1.bf16.msra.mxu0 %v792
    %2049 = vmatprep.subr.bf16.mxu0 %v797
    %2050 = vmatpush1.bf16.msra.mxu0 %v796
    %2051 = vmatprep.subr.bf16.mxu0 %v801
    %2052 = vmatpush1.bf16.msra.mxu0 %v800
    %2053 = vmatprep.subr.bf16.mxu0 %v805
    %2054 = vmatpush1.bf16.msra.mxu0 %v804
    %2055 = vmatprep.subr.bf16.mxu0 %v809
    %2056 = vmatpush1.bf16.msra.mxu0 %v808
    %2057 = vmatprep.subr.bf16.mxu0 %v813
    %2058 = vmatpush1.bf16.msra.mxu0 %v812
    %2059 = vmatprep.subr.bf16.mxu0 0
    %2060 = vmatpush1.bf16.msra.mxu0 0
    %2061 = vmatprep.subr.bf16.mxu0 0
    %2062 = vmatpush1.bf16.msra.mxu0 0
    %2063 = vmatprep.subr.bf16.mxu0 0
    %2064 = vmatpush1.bf16.msra.mxu0 0
    %2065 = vmatprep.subr.bf16.mxu0 0
    %2066 = vmatpush1.bf16.msra.mxu0 0
    %2067 = vmatprep.subr.bf16.mxu0 0
    %2068 = vmatpush1.bf16.msra.mxu0 0
    %2069 = vmatprep.subr.bf16.mxu0 0
    %2070 = vmatpush1.bf16.msra.mxu0 0
    %2071 = vmatprep.subr.bf16.mxu0 0
    %2072 = vmatpush1.bf16.msra.mxu0 0
    %2073 = vmatprep.subr.bf16.mxu0 0
    %2074 = vmatpush1.bf16.msra.mxu0 0
    %2075 = vmatprep.mubr.bf16.mxu0 0
    %2076 = vmatmul.mubr.bf16.gmra.mrb[0].mxu0 %v1985
    %v2077 = vpop.f32.mrb[0].mxu0
    %v2078 = vadd.f32 0.0, %v2077
    %v2079 = vpop.f32.mrb[0].mxu0
    %v2080 = vadd.f32 0.0, %v2079
    %v2081 = vpop.f32.mrb[0].mxu0
    %v2082 = vadd.f32 0.0, %v2081
    %v2083 = vpop.f32.mrb[0].mxu0
    %v2084 = vadd.f32 0.0, %v2083
    %2085 = vdwg.mxu0
    %v2086 = vunpack.c.l.bf16 %v1996
    %v2087 = vunpack.c.l.bf16 %v1997
    %v2088 = vunpack.c.l.bf16 %v1998
    %v2089 = vunpack.c.l.bf16 %v1999
    %v2090 = vunpack.c.h.bf16 %v1996
    %v2091 = vunpack.c.h.bf16 %v1997
    %v2092 = vunpack.c.h.bf16 %v1998
    %v2093 = vunpack.c.h.bf16 %v1999
    %v2094 = vadd.f32 %v2086, %v2035
    %v2095 = vadd.f32 %v2087, %v2037
    %v2096 = vadd.f32 %v2088, %v2078
    %v2097 = vadd.f32 %v2089, %v2080
    %v2098 = vadd.f32 %v2090, %v2039
    %v2099 = vadd.f32 %v2091, %v2041
    %v2100 = vadd.f32 %v2092, %v2082
    %v2101 = vadd.f32 %v2093, %v2084
    %v2102 = vxor.u32 %v2094, 2147483648
    %v2103 = vxor.u32 %v2098, 2147483648
    %v2104 = vmul.f32 %v2102, 1.442695
    %v2105 = vpow.pop %v2104
    %v2106 = vmul.f32 %v2103, 1.442695
    %v2107 = vpow.pop %v2106
    %v2108 = vadd.f32 %v2105, 1.0
    %v2109 = vadd.f32 %v2107, 1.0
    %v2110 = vrcp.pop %v2108
    %v2111 = vmul.f32 1.0, %v2110
    %v2112 = vrcp.pop %v2109
    %v2113 = vmul.f32 1.0, %v2112
    %v2114 = vxor.u32 %v2095, 2147483648
    %v2115 = vxor.u32 %v2099, 2147483648
    %v2116 = vmul.f32 %v2114, 1.442695
    %v2117 = vpow.pop %v2116
    %v2118 = vmul.f32 %v2115, 1.442695
    %v2119 = vpow.pop %v2118
    %v2120 = vadd.f32 %v2117, 1.0
    %v2121 = vadd.f32 %v2119, 1.0
    %v2122 = vrcp.pop %v2120
    %v2123 = vmul.f32 1.0, %v2122
    %v2124 = vrcp.pop %v2121
    %v2125 = vmul.f32 1.0, %v2124
    %v2126 = vtanh.pop %v2096
    %v2127 = vtanh.pop %v2100
    %v2128 = vxor.u32 %v2097, 2147483648
    %v2129 = vxor.u32 %v2101, 2147483648
    %v2130 = vmul.f32 %v2128, 1.442695
    %v2131 = vpow.pop %v2130
    %v2132 = vmul.f32 %v2129, 1.442695
    %v2133 = vpow.pop %v2132
    %v2134 = vadd.f32 %v2131, 1.0
    %v2135 = vadd.f32 %v2133, 1.0
    %v2136 = vrcp.pop %v2134
    %v2137 = vmul.f32 1.0, %v2136
    %v2138 = vrcp.pop %v2135
    %v2139 = vmul.f32 1.0, %v2138
    %v2140 = vmul.f32 %v2123, %v1979
    %v2141 = vmul.f32 %v2125, %v1980
    %v2142 = vmul.f32 %v2111, %v2126
    %v2143 = vmul.f32 %v2113, %v2127
    %v2144 = vadd.f32 %v2140, %v2142
    %v2145 = vadd.f32 %v2141, %v2143
    %v2146 = vtanh.pop %v2144
    %v2147 = vtanh.pop %v2145
    %v2148 = vmul.f32 %v2137, %v2146
    %v2149 = vmul.f32 %v2139, %v2147
    %v2150 = vpack.c.bf16 %v2149, %v2148
    %v2152 = vunpack.c.l.b16 %v2150
    %v2153 = vunpack.c.h.b16 %v2150
    %v2154 = vpack.c.b16 %v2152, %v2152
    %v2155 = vpack.c.b16 %v2153, %v2153
    %s2158 = scalar_lea.vmem [#allocation13], 56
    %2159 = vst [vmem:[%s2158] sm:$0xf] %v2154
    %2160 = vst [vmem:[%s2158 + $0x4] sm:$0xf] %v2155
    %2161 = vst [vmem:[#allocation2] sm:$0xff] %v2150
    %2162 = vst [vmem:[#allocation3] sm:$0xff] %v2144
    %2163 = vst [vmem:[#allocation3 + $0x8] sm:$0xff] %v2145
    // Predicated region
    $region38: #{lm_lstm_forward.2} parent=1 // pred_check
      _
    $region39: #{lm_lstm_forward.2} parent=1 // pred_check_branch
      %2165 = sbr.rel (0) target = $region41
    $region40: #{lm_lstm_forward.2} parent=1 // pred_region
      %s2167 = ssub.s32 1024, 1024
      %2168 = vsyncadd [#allocation7], %s2167
      %s2169 = sshll.u32 [#allocation13], 4
      %s2170 = int_to_ptr.vmem [resolvable:$true] %s2169
      %2175 = dma.vmem_to_hbm [thread:$0]  %s2170, 1024, %s4, [#allocation7], 64, 64, 4
    $region41: #{lm_lstm_forward.2} parent=1 // pred_fallthru
      _
    // Predicated region
    $region42: #{lm_lstm_forward.2} parent=1 // pred_check
      _
    $region43: #{lm_lstm_forward.2} parent=1 // pred_check_branch
      %2177 = sbr.rel (0) target = $region45
    $region44: #{lm_lstm_forward.2} parent=1 // pred_region
      %2178 = dma.done [#allocation7], 1024
    $region45: #{lm_lstm_forward.2} parent=1 // pred_fallthru
      _
    %2179 = vsyncpa [#allocation6], 1
    %2180 = vsyncpa [#allocation9], 1
    %2181 = vsyncpa [#allocation12], 1
    %2182 = vsyncpa [#allocation7], 1

</llo_original>
